<compile_context>
chip_gen: v5e
topology: v5e:2x2
jax: 0.10.0
libtpu: 0.0.40
codegen_flags: <defaults>
</compile_context>

<pallas_src>
import jax
import jax.numpy as jnp
from jax import lax
from jax.experimental import pallas as pl
from jax.experimental.pallas import tpu as pltpu


# ---------------------------------------------------------------------------
# Pallas kernel (one grid step = one chunk of timesteps)
# ---------------------------------------------------------------------------
def bilstm_kernel(x2_ref,       # (TC*B, 2E)  bf16   [x[t] | x[T-1-t]] rows of this chunk
                  wih_ref,      # (2E, 8Hp)   bf16   fused fwd/bwd input weights (pre-scaled)
                  whh_ref,      # (2Hp, 8Hp)  bf16   block-diag fused recurrent weights (pre-scaled)
                  bias_ref,     # (1, 8Hp)    f32    fused biases (pre-scaled)
                  wc_ref,       # (2Hp, Lp)   bf16   classifier weight (padded)
                  bc_ref,       # (1, Lp)     f32    classifier bias (padded)
                  out_ref,      # (B, Lp)     f32
                  gx_ref,       # scratch (TC*B, 8Hp) f32  per-chunk input gates
                  h_ref,        # scratch (B, 2Hp)    f32  [h_fwd | h_bwd], persists across chunks
                  c_ref):       # scratch (B, 2Hp)    f32  [c_fwd | c_bwd], persists across chunks
    H2 = whh_ref.shape[0]            # 2*Hp  (multiple of 128 lanes)
    G = 4 * H2                       # 8*Hp
    B = h_ref.shape[0]
    TC = gx_ref.shape[0] // B        # timesteps in this chunk

    ct = pl.program_id(0)

    @pl.when(ct == 0)
    def _():
        h_ref[...] = jnp.zeros_like(h_ref)
        c_ref[...] = jnp.zeros_like(c_ref)

    # Hoisted per-chunk input projection: one wide MXU matmul, bias folded in.
    # The 0.5 sigmoid pre-scale is already folded into wih/whh/bias columns.
    gx_ref[...] = (jnp.dot(x2_ref[...], wih_ref[...],
                           preferred_element_type=jnp.float32)
                   + bias_ref[...])

    # Hoisted lane constants for the single-tanh activation:
    # sigmoid(x) = 0.5*tanh(x/2) + 0.5 on i/f/o lanes, tanh(x) on g lanes.
    lane = lax.broadcasted_iota(jnp.int32, (B, G), 1)
    is_g = jnp.logical_and(lane >= 2 * H2, lane < 3 * H2)
    alpha = jnp.where(is_g, 1.0, 0.5).astype(jnp.float32)
    beta = jnp.where(is_g, 0.0, 0.5).astype(jnp.float32)

    def step(t, carry):
        h, c = carry                                     # (B, 2Hp) f32 in vregs
        row = pl.multiple_of(t * B, B)
        gx_t = gx_ref[pl.ds(row, B), :]                  # (B, 8Hp) f32

        # Single fused recurrent matmul for both directions (block-diag whh).
        # TODO(synk): hold whh resident in MXU weight registers across the loop
        # (pltpu.matmul_push_rhs / matmul_acc_lhs / matmul_pop) instead of
        # re-streaming it each step; kept as jnp.dot for portability across
        # v5e/v6e/v7x MXU widths.
        gates = gx_t + jnp.dot(h.astype(jnp.bfloat16), whh_ref[...],
                               preferred_element_type=jnp.float32)

        act = jnp.tanh(gates) * alpha + beta             # one EUP pass, full tile
        i = act[:, 0 * H2:1 * H2]                        # each slice = 128-lane aligned
        f = act[:, 1 * H2:2 * H2]
        g = act[:, 2 * H2:3 * H2]
        o = act[:, 3 * H2:4 * H2]

        c_new = f * c + i * g
        h_new = o * jnp.tanh(c_new)
        return (h_new, c_new)

    h_fin, c_fin = lax.fori_loop(0, TC, step, (h_ref[...], c_ref[...]),
                                 unroll=True)
    h_ref[...] = h_fin
    c_ref[...] = c_fin

    # h_fin already holds concat([h_fwd, h_bwd], -1) == PyTorch's
    # last_h.transpose(0,1).reshape(B, 2H).  Written every chunk (cheap) so
    # the resident output block is always defined; HBM writeback happens once.
    out_ref[...] = (jnp.dot(h_fin.astype(jnp.bfloat16), wc_ref[...],
                            preferred_element_type=jnp.float32)
                    + bc_ref[...])


# ---------------------------------------------------------------------------
# Parameter fusion + padding (done once, plain JAX)
# ---------------------------------------------------------------------------
def _fuse_params(params, E, H, Hp, L, Lp):
    """Fused, lane-padded, bf16 weights.

    Gate column layout over 8*Hp lanes: [i | f | g | o], each block 2*Hp wide
    = [forward Hp | backward Hp]; real H values occupy the first H lanes of
    each Hp half, the rest are zero (inert padding).
    The 0.5 pre-scale for sigmoid gates (i, f, o) is folded into the weights
    and bias so the kernel can use sigmoid(x) = 0.5*tanh(x/2) + 0.5 with a
    single tanh pass.
    """
    wih = jnp.zeros((2 * E, 8 * Hp), jnp.float32)
    whh = jnp.zeros((2 * Hp, 8 * Hp), jnp.float32)
    b = jnp.zeros((1, 8 * Hp), jnp.float32)
    for gi in range(4):
        s = 1.0 if gi == 2 else 0.5            # g gate keeps scale 1 (tanh)
        col_f = slice(gi * 2 * Hp, gi * 2 * Hp + H)
        col_b = slice(gi * 2 * Hp + Hp, gi * 2 * Hp + Hp + H)
        src = slice(gi * H, (gi + 1) * H)
        wih = wih.at[0:E, col_f].set(s * params["wih_f"][:, src])
        wih = wih.at[E:2 * E, col_b].set(s * params["wih_b"][:, src])
        whh = whh.at[0:H, col_f].set(s * params["whh_f"][:, src])
        whh = whh.at[Hp:Hp + H, col_b].set(s * params["whh_b"][:, src])
        b = b.at[0:1, col_f].set(s * params["b_f"][:, src])
        b = b.at[0:1, col_b].set(s * params["b_b"][:, src])

    # Classifier padded to (2Hp, Lp): rows [0:H] <- fwd, [Hp:Hp+H] <- bwd.
    wc = jnp.zeros((2 * Hp, Lp), jnp.float32)
    wc = wc.at[0:H, 0:L].set(params["wc"][0:H])
    wc = wc.at[Hp:Hp + H, 0:L].set(params["wc"][H:2 * H])
    bc = jnp.zeros((1, Lp), jnp.float32)
    bc = bc.at[0:1, 0:L].set(params["bc"])

    return (wih.astype(jnp.bfloat16), whh.astype(jnp.bfloat16), b,
            wc.astype(jnp.bfloat16), bc)


# ---------------------------------------------------------------------------
# Wrapper
# ---------------------------------------------------------------------------
def bilstm_forward(x_emb, params, *, t_chunk=4):
    """x_emb: (B0, T, E) float32 embedded sequence -> (B0, num_labels)."""
    B0, T, E = x_emb.shape
    H = params["whh_f"].shape[0]
    L = params["wc"].shape[1]

    # Lane/sublane friendly padded sizes.
    B = ((B0 + 7) // 8) * 8                 # f32 sublane multiple
    Hp = ((H + 63) // 64) * 64              # 2*Hp multiple of 128 lanes
    Lp = ((L + 127) // 128) * 128           # lane-dense classifier output

    # Largest time chunk <= t_chunk that divides T.
    tc = max(1, min(t_chunk, T))
    while T % tc:
        tc -= 1
    grid = (T // tc,)

    if B != B0:
        x_emb = jnp.pad(x_emb, ((0, B - B0), (0, 0), (0, 0)))

    x_tbe = jnp.transpose(x_emb, (1, 0, 2))                   # (T, B, E)
    # fwd direction consumes x[t]; bwd direction consumes x[T-1-t].
    # TODO(synk): drop this lane concat (stream x once, read bwd gates from the
    # mirrored time chunk) to halve streamed input bytes.
    x2 = jnp.concatenate([x_tbe, x_tbe[::-1]], axis=-1)       # (T, B, 2E)
    x2_flat = x2.reshape(T * B, 2 * E).astype(jnp.bfloat16)   # (T*B, 2E)

    wih, whh, bias, wc, bc = _fuse_params(params, E, H, Hp, L, Lp)

    out = pl.pallas_call(
        bilstm_kernel,
        out_shape=jax.ShapeDtypeStruct((B, Lp), jnp.float32),
        grid_spec=pltpu.PrefetchScalarGridSpec(
            num_scalar_prefetch=0,
            grid=grid,
            in_specs=[
                pl.BlockSpec((tc * B, 2 * E), lambda t: (t, 0)),    # x2 chunk
                pl.BlockSpec((2 * E, 8 * Hp), lambda t: (0, 0)),    # wih
                pl.BlockSpec((2 * Hp, 8 * Hp), lambda t: (0, 0)),   # whh
                pl.BlockSpec((1, 8 * Hp), lambda t: (0, 0)),        # bias
                pl.BlockSpec((2 * Hp, Lp), lambda t: (0, 0)),       # wc
                pl.BlockSpec((1, Lp), lambda t: (0, 0)),            # bc
            ],
            out_specs=pl.BlockSpec((B, Lp), lambda t: (0, 0)),
            scratch_shapes=[
                pltpu.VMEM((tc * B, 8 * Hp), jnp.float32),  # gx (per chunk only)
                pltpu.VMEM((B, 2 * Hp), jnp.float32),       # h, persists across chunks
                pltpu.VMEM((B, 2 * Hp), jnp.float32),       # c, persists across chunks
            ],
        ),
        # Serial recurrence over time chunks.
        # TODO(synk): for workloads with many batch tiles add a leading
        # 'parallel' batch-tile axis so v7x shards it across both TensorCores.
        compiler_params=pltpu.CompilerParams(
            dimension_semantics=("arbitrary",)),
    )(x2_flat, wih, whh, bias, wc, bc)

    return out[:B0, :L]


# ---------------------------------------------------------------------------
# Params + pure-JAX reference
# ---------------------------------------------------------------------------
def init_params(key, vocab, glove_dim, hidden, num_labels):
    ks = jax.random.split(key, 10)
    s = 0.1
    return {
        # synthetic "glove" embedding table (replaces pickle load)
        "embs": jax.random.normal(ks[0], (vocab, glove_dim), jnp.float32),
        # forward direction (stored transposed: (in, 4H), gate order i,f,g,o)
        "wih_f": s * jax.random.normal(ks[1], (glove_dim, 4 * hidden), jnp.float32),
        "whh_f": s * jax.random.normal(ks[2], (hidden, 4 * hidden), jnp.float32),
        "b_f": s * jax.random.normal(ks[3], (1, 4 * hidden), jnp.float32),  # b_ih + b_hh
        # backward direction
        "wih_b": s * jax.random.normal(ks[4], (glove_dim, 4 * hidden), jnp.float32),
        "whh_b": s * jax.random.normal(ks[5], (hidden, 4 * hidden), jnp.float32),
        "b_b": s * jax.random.normal(ks[6], (1, 4 * hidden), jnp.float32),
        # classifier
        "wc": s * jax.random.normal(ks[7], (2 * hidden, num_labels), jnp.float32),
        "bc": s * jax.random.normal(ks[8], (1, num_labels), jnp.float32),
    }


def _lstm_step_ref(x_t, h, c, wih, whh, bias, H):
    gates = x_t @ wih + h @ whh + bias
    i = jax.nn.sigmoid(gates[:, 0 * H:1 * H])
    f = jax.nn.sigmoid(gates[:, 1 * H:2 * H])
    g = jnp.tanh(gates[:, 2 * H:3 * H])
    o = jax.nn.sigmoid(gates[:, 3 * H:4 * H])
    c_new = f * c + i * g
    return o * jnp.tanh(c_new), c_new


def reference_forward(x_emb, params):
    """Pure-JAX f32 reference for the same math (correctness check)."""
    B, T, E = x_emb.shape
    H = params["whh_f"].shape[0]

    def run_dir(xs, wih, whh, b):
        def step(carry, x_t):
            h, c = carry
            h, c = _lstm_step_ref(x_t, h, c, wih, whh, b, H)
            return (h, c), None
        h0 = jnp.zeros((B, H), jnp.float32)
        c0 = jnp.zeros((B, H), jnp.float32)
        (h_last, _), _ = lax.scan(step, (h0, c0), xs)
        return h_last

    x_tbe = jnp.transpose(x_emb, (1, 0, 2))
    h_f = run_dir(x_tbe, params["wih_f"], params["whh_f"], params["b_f"])
    h_b = run_dir(x_tbe[::-1], params["wih_b"], params["whh_b"], params["b_b"])
    h_cat = jnp.concatenate([h_f, h_b], axis=1)
    return h_cat @ params["wc"] + params["bc"]


if __name__ == "__main__":
    B, T = 2, 8           # batch, sequence length
    VOCAB = 100
    GLOVE_DIM = 32        # self.glove_hidden
    HIDDEN = 32           # self.hidden
    NUM_LABELS = 4

    key = jax.random.PRNGKey(0)
    k_params, k_ids = jax.random.split(key)
    params = init_params(k_params, VOCAB, GLOVE_DIM, HIDDEN, NUM_LABELS)

    input_ids = jax.random.randint(k_ids, (B, T), 0, VOCAB, dtype=jnp.int32)
    # embedding lookup (gather) kept in plain JAX glue
    x_emb = params["embs"][input_ids]                         # (B, T, E)

    out = bilstm_forward(x_emb, params)
    out = jax.block_until_ready(out)

    ref = jax.block_until_ready(reference_forward(x_emb, params))
    assert out.shape == (B, NUM_LABELS)
    # bf16 MXU operands + bf16 h cast per step are intentional precision
    # changes vs the f32 PyTorch LSTM; tolerance covers them at this scale.
    assert jnp.allclose(out, ref, rtol=2e-2, atol=2e-2), "mismatch vs reference"

    print("KERNEL_OK")
</pallas_src>

<mosaic_0001>
module attributes {stable_mosaic.version = 11 : i64} {
  func.func @bilstm_kernel(%arg0: i32, %arg1: memref<32x64xbf16, #tpu.memory_space<vmem>>, %arg2: memref<64x512xbf16, #tpu.memory_space<vmem>>, %arg3: memref<128x512xbf16, #tpu.memory_space<vmem>>, %arg4: memref<1x512xf32, #tpu.memory_space<vmem>>, %arg5: memref<128x128xbf16, #tpu.memory_space<vmem>>, %arg6: memref<1x128xf32, #tpu.memory_space<vmem>>, %arg7: memref<8x128xf32, #tpu.memory_space<vmem>>, %arg8: memref<32x512xf32, #tpu.memory_space<vmem>>, %arg9: memref<8x128xf32, #tpu.memory_space<vmem>>, %arg10: memref<8x128xf32, #tpu.memory_space<vmem>>) attributes {dimension_semantics = [#tpu.dimension_semantics<arbitrary>], iteration_bounds = array<i64: 2>, scalar_prefetch = 0 : i64, scratch_operands = 3 : i64, tpu.core_type = #tpu.core_type<tc>, window_params = [{transform_indices = @transform_0, window_bounds = array<i64: 32, 64>}, {pipeline_mode = #tpu.pipeline_mode<synchronous>, transform_indices = @transform_1, window_bounds = array<i64: 64, 512>}, {pipeline_mode = #tpu.pipeline_mode<synchronous>, transform_indices = @transform_2, window_bounds = array<i64: 128, 512>}, {pipeline_mode = #tpu.pipeline_mode<synchronous>, transform_indices = @transform_3, window_bounds = array<i64: 1, 512>}, {pipeline_mode = #tpu.pipeline_mode<synchronous>, transform_indices = @transform_4, window_bounds = array<i64: 128, 128>}, {pipeline_mode = #tpu.pipeline_mode<synchronous>, transform_indices = @transform_5, window_bounds = array<i64: 1, 128>}, {pipeline_mode = #tpu.pipeline_mode<synchronous>, transform_indices = @transform_6, window_bounds = array<i64: 8, 128>}]} {
    %c0_i32 = arith.constant 0 : i32
    %0 = arith.cmpi eq, %arg0, %c0_i32 : i32
    %1 = arith.extui %0 : i1 to i32
    %c0_i32_0 = arith.constant 0 : i32
    %2 = arith.cmpi ne, %1, %c0_i32_0 : i32
    scf.if %2 {
      %cst_47 = arith.constant 0.000000e+00 : f32
      %113 = vector.broadcast %cst_47 : f32 to vector<8x128xf32>
      %c0_48 = arith.constant 0 : index
      %c0_49 = arith.constant 0 : index
      %114 = vector.load %arg9[%c0_48, %c0_49] : memref<8x128xf32, #tpu.memory_space<vmem>>, vector<8x128xf32>
      tpu.vector_store %arg9[%c0_48, %c0_49], %113 {strides = array<i32>} : memref<8x128xf32, #tpu.memory_space<vmem>>, vector<8x128xf32>,
      %cst_50 = arith.constant 0.000000e+00 : f32
      %115 = vector.broadcast %cst_50 : f32 to vector<8x128xf32>
      %c0_51 = arith.constant 0 : index
      %c0_52 = arith.constant 0 : index
      %116 = vector.load %arg10[%c0_51, %c0_52] : memref<8x128xf32, #tpu.memory_space<vmem>>, vector<8x128xf32>
      tpu.vector_store %arg10[%c0_51, %c0_52], %115 {strides = array<i32>} : memref<8x128xf32, #tpu.memory_space<vmem>>, vector<8x128xf32>,
    } else {
    }
    %c0 = arith.constant 0 : index
    %c0_1 = arith.constant 0 : index
    %3 = vector.load %arg1[%c0, %c0_1] : memref<32x64xbf16, #tpu.memory_space<vmem>>, vector<32x64xbf16>
    %c0_2 = arith.constant 0 : index
    %c0_3 = arith.constant 0 : index
    %4 = vector.load %arg2[%c0_2, %c0_3] : memref<64x512xbf16, #tpu.memory_space<vmem>>, vector<64x512xbf16>
    %cst = arith.constant dense<0.000000e+00> : vector<32x512xf32>
    %5 = tpu.matmul %3, %4, %cst {dimension_numbers = #tpu.dot_dimension_numbers<[1], [0], [0], [1], [0, 0, 1, 1], [], []>} : vector<32x64xbf16>, vector<64x512xbf16>, vector<32x512xf32> -> vector<32x512xf32>
    %c0_4 = arith.constant 0 : index
    %c0_5 = arith.constant 0 : index
    %6 = vector.load %arg4[%c0_4, %c0_5] : memref<1x512xf32, #tpu.memory_space<vmem>>, vector<1x512xf32>
    %7 = vector.broadcast %6 : vector<1x512xf32> to vector<32x512xf32>
    %8 = arith.addf %5, %7 : vector<32x512xf32>
    %c0_6 = arith.constant 0 : index
    %c0_7 = arith.constant 0 : index
    %9 = vector.load %arg8[%c0_6, %c0_7] : memref<32x512xf32, #tpu.memory_space<vmem>>, vector<32x512xf32>
    tpu.vector_store %arg8[%c0_6, %c0_7], %8 {strides = array<i32>} : memref<32x512xf32, #tpu.memory_space<vmem>>, vector<32x512xf32>,
    %10 = tpu.iota {dimensions = array<i32: 1>} : vector<8x512xi32>
    %c256_i32 = arith.constant 256 : i32
    %11 = vector.broadcast %c256_i32 : i32 to vector<8x512xi32>
    %12 = arith.cmpi sge, %10, %11 : vector<8x512xi32>
    %c384_i32 = arith.constant 384 : i32
    %13 = vector.broadcast %c384_i32 : i32 to vector<8x512xi32>
    %14 = arith.cmpi slt, %10, %13 : vector<8x512xi32>
    %15 = arith.andi %12, %14 : vector<8x512xi1>
    %cst_8 = arith.constant 1.000000e+00 : f32
    %cst_9 = arith.constant 5.000000e-01 : f32
    %16 = vector.broadcast %cst_8 : f32 to vector<8x512xf32>
    %17 = vector.broadcast %cst_9 : f32 to vector<8x512xf32>
    %18 = arith.select %15, %16, %17 : vector<8x512xi1>, vector<8x512xf32>
    %cst_10 = arith.constant 0.000000e+00 : f32
    %cst_11 = arith.constant 5.000000e-01 : f32
    %19 = vector.broadcast %cst_10 : f32 to vector<8x512xf32>
    %20 = vector.broadcast %cst_11 : f32 to vector<8x512xf32>
    %21 = arith.select %15, %19, %20 : vector<8x512xi1>, vector<8x512xf32>
    %c0_12 = arith.constant 0 : index
    %c0_13 = arith.constant 0 : index
    %22 = vector.load %arg9[%c0_12, %c0_13] : memref<8x128xf32, #tpu.memory_space<vmem>>, vector<8x128xf32>
    %c0_14 = arith.constant 0 : index
    %c0_15 = arith.constant 0 : index
    %23 = vector.load %arg10[%c0_14, %c0_15] : memref<8x128xf32, #tpu.memory_space<vmem>>, vector<8x128xf32>
    %c0_i32_16 = arith.constant 0 : i32
    %c8_i32 = arith.constant 8 : i32
    %24 = arith.muli %c0_i32_16, %c8_i32 : i32
    %25 = tpu.assume_multiple %24, 8 : i32
    %26 = arith.index_cast %25 : i32 to index
    %c0_17 = arith.constant 0 : index
    %27 = vector.load %arg8[%26, %c0_17] : memref<32x512xf32, #tpu.memory_space<vmem>>, vector<8x512xf32>
    %28 = arith.truncf %22 : vector<8x128xf32> to vector<8x128xbf16>
    %c0_18 = arith.constant 0 : index
    %c0_19 = arith.constant 0 : index
    %29 = vector.load %arg3[%c0_18, %c0_19] : memref<128x512xbf16, #tpu.memory_space<vmem>>, vector<128x512xbf16>
    %cst_20 = arith.constant dense<0.000000e+00> : vector<8x512xf32>
    %30 = tpu.matmul %28, %29, %cst_20 {dimension_numbers = #tpu.dot_dimension_numbers<[1], [0], [0], [1], [0, 0, 1, 1], [], []>} : vector<8x128xbf16>, vector<128x512xbf16>, vector<8x512xf32> -> vector<8x512xf32>
    %31 = arith.addf %27, %30 : vector<8x512xf32>
    %32 = math.tanh %31 : vector<8x512xf32>
    %33 = arith.mulf %32, %18 : vector<8x512xf32>
    %34 = arith.addf %33, %21 : vector<8x512xf32>
    %35 = vector.extract_strided_slice %34 {offsets = [0, 0], sizes = [8, 128], strides = [1, 1]} : vector<8x512xf32> to vector<8x128xf32>
    %36 = vector.extract_strided_slice %34 {offsets = [0, 128], sizes = [8, 128], strides = [1, 1]} : vector<8x512xf32> to vector<8x128xf32>
    %37 = vector.extract_strided_slice %34 {offsets = [0, 256], sizes = [8, 128], strides = [1, 1]} : vector<8x512xf32> to vector<8x128xf32>
    %38 = vector.extract_strided_slice %34 {offsets = [0, 384], sizes = [8, 128], strides = [1, 1]} : vector<8x512xf32> to vector<8x128xf32>
    %39 = arith.mulf %36, %23 : vector<8x128xf32>
    %40 = arith.mulf %35, %37 : vector<8x128xf32>
    %41 = arith.addf %39, %40 : vector<8x128xf32>
    %42 = math.tanh %41 : vector<8x128xf32>
    %43 = arith.mulf %38, %42 : vector<8x128xf32>
    %c1_i32 = arith.constant 1 : i32
    %c8_i32_21 = arith.constant 8 : i32
    %44 = arith.muli %c1_i32, %c8_i32_21 : i32
    %45 = tpu.assume_multiple %44, 8 : i32
    %46 = arith.index_cast %45 : i32 to index
    %c0_22 = arith.constant 0 : index
    %47 = vector.load %arg8[%46, %c0_22] : memref<32x512xf32, #tpu.memory_space<vmem>>, vector<8x512xf32>
    %48 = arith.truncf %43 : vector<8x128xf32> to vector<8x128xbf16>
    %c0_23 = arith.constant 0 : index
    %c0_24 = arith.constant 0 : index
    %49 = vector.load %arg3[%c0_23, %c0_24] : memref<128x512xbf16, #tpu.memory_space<vmem>>, vector<128x512xbf16>
    %cst_25 = arith.constant dense<0.000000e+00> : vector<8x512xf32>
    %50 = tpu.matmul %48, %49, %cst_25 {dimension_numbers = #tpu.dot_dimension_numbers<[1], [0], [0], [1], [0, 0, 1, 1], [], []>} : vector<8x128xbf16>, vector<128x512xbf16>, vector<8x512xf32> -> vector<8x512xf32>
    %51 = arith.addf %47, %50 : vector<8x512xf32>
    %52 = math.tanh %51 : vector<8x512xf32>
    %53 = arith.mulf %52, %18 : vector<8x512xf32>
    %54 = arith.addf %53, %21 : vector<8x512xf32>
    %55 = vector.extract_strided_slice %54 {offsets = [0, 0], sizes = [8, 128], strides = [1, 1]} : vector<8x512xf32> to vector<8x128xf32>
    %56 = vector.extract_strided_slice %54 {offsets = [0, 128], sizes = [8, 128], strides = [1, 1]} : vector<8x512xf32> to vector<8x128xf32>
    %57 = vector.extract_strided_slice %54 {offsets = [0, 256], sizes = [8, 128], strides = [1, 1]} : vector<8x512xf32> to vector<8x128xf32>
    %58 = vector.extract_strided_slice %54 {offsets = [0, 384], sizes = [8, 128], strides = [1, 1]} : vector<8x512xf32> to vector<8x128xf32>
    %59 = arith.mulf %56, %41 : vector<8x128xf32>
    %60 = arith.mulf %55, %57 : vector<8x128xf32>
    %61 = arith.addf %59, %60 : vector<8x128xf32>
    %62 = math.tanh %61 : vector<8x128xf32>
    %63 = arith.mulf %58, %62 : vector<8x128xf32>
    %c2_i32 = arith.constant 2 : i32
    %c8_i32_26 = arith.constant 8 : i32
    %64 = arith.muli %c2_i32, %c8_i32_26 : i32
    %65 = tpu.assume_multiple %64, 8 : i32
    %66 = arith.index_cast %65 : i32 to index
    %c0_27 = arith.constant 0 : index
    %67 = vector.load %arg8[%66, %c0_27] : memref<32x512xf32, #tpu.memory_space<vmem>>, vector<8x512xf32>
    %68 = arith.truncf %63 : vector<8x128xf32> to vector<8x128xbf16>
    %c0_28 = arith.constant 0 : index
    %c0_29 = arith.constant 0 : index
    %69 = vector.load %arg3[%c0_28, %c0_29] : memref<128x512xbf16, #tpu.memory_space<vmem>>, vector<128x512xbf16>
    %cst_30 = arith.constant dense<0.000000e+00> : vector<8x512xf32>
    %70 = tpu.matmul %68, %69, %cst_30 {dimension_numbers = #tpu.dot_dimension_numbers<[1], [0], [0], [1], [0, 0, 1, 1], [], []>} : vector<8x128xbf16>, vector<128x512xbf16>, vector<8x512xf32> -> vector<8x512xf32>
    %71 = arith.addf %67, %70 : vector<8x512xf32>
    %72 = math.tanh %71 : vector<8x512xf32>
    %73 = arith.mulf %72, %18 : vector<8x512xf32>
    %74 = arith.addf %73, %21 : vector<8x512xf32>
    %75 = vector.extract_strided_slice %74 {offsets = [0, 0], sizes = [8, 128], strides = [1, 1]} : vector<8x512xf32> to vector<8x128xf32>
    %76 = vector.extract_strided_slice %74 {offsets = [0, 128], sizes = [8, 128], strides = [1, 1]} : vector<8x512xf32> to vector<8x128xf32>
    %77 = vector.extract_strided_slice %74 {offsets = [0, 256], sizes = [8, 128], strides = [1, 1]} : vector<8x512xf32> to vector<8x128xf32>
    %78 = vector.extract_strided_slice %74 {offsets = [0, 384], sizes = [8, 128], strides = [1, 1]} : vector<8x512xf32> to vector<8x128xf32>
    %79 = arith.mulf %76, %61 : vector<8x128xf32>
    %80 = arith.mulf %75, %77 : vector<8x128xf32>
    %81 = arith.addf %79, %80 : vector<8x128xf32>
    %82 = math.tanh %81 : vector<8x128xf32>
    %83 = arith.mulf %78, %82 : vector<8x128xf32>
    %c3_i32 = arith.constant 3 : i32
    %c8_i32_31 = arith.constant 8 : i32
    %84 = arith.muli %c3_i32, %c8_i32_31 : i32
    %85 = tpu.assume_multiple %84, 8 : i32
    %86 = arith.index_cast %85 : i32 to index
    %c0_32 = arith.constant 0 : index
    %87 = vector.load %arg8[%86, %c0_32] : memref<32x512xf32, #tpu.memory_space<vmem>>, vector<8x512xf32>
    %88 = arith.truncf %83 : vector<8x128xf32> to vector<8x128xbf16>
    %c0_33 = arith.constant 0 : index
    %c0_34 = arith.constant 0 : index
    %89 = vector.load %arg3[%c0_33, %c0_34] : memref<128x512xbf16, #tpu.memory_space<vmem>>, vector<128x512xbf16>
    %cst_35 = arith.constant dense<0.000000e+00> : vector<8x512xf32>
    %90 = tpu.matmul %88, %89, %cst_35 {dimension_numbers = #tpu.dot_dimension_numbers<[1], [0], [0], [1], [0, 0, 1, 1], [], []>} : vector<8x128xbf16>, vector<128x512xbf16>, vector<8x512xf32> -> vector<8x512xf32>
    %91 = arith.addf %87, %90 : vector<8x512xf32>
    %92 = math.tanh %91 : vector<8x512xf32>
    %93 = arith.mulf %92, %18 : vector<8x512xf32>
    %94 = arith.addf %93, %21 : vector<8x512xf32>
    %95 = vector.extract_strided_slice %94 {offsets = [0, 0], sizes = [8, 128], strides = [1, 1]} : vector<8x512xf32> to vector<8x128xf32>
    %96 = vector.extract_strided_slice %94 {offsets = [0, 128], sizes = [8, 128], strides = [1, 1]} : vector<8x512xf32> to vector<8x128xf32>
    %97 = vector.extract_strided_slice %94 {offsets = [0, 256], sizes = [8, 128], strides = [1, 1]} : vector<8x512xf32> to vector<8x128xf32>
    %98 = vector.extract_strided_slice %94 {offsets = [0, 384], sizes = [8, 128], strides = [1, 1]} : vector<8x512xf32> to vector<8x128xf32>
    %99 = arith.mulf %96, %81 : vector<8x128xf32>
    %100 = arith.mulf %95, %97 : vector<8x128xf32>
    %101 = arith.addf %99, %100 : vector<8x128xf32>
    %102 = math.tanh %101 : vector<8x128xf32>
    %103 = arith.mulf %98, %102 : vector<8x128xf32>
    %c4_i32 = arith.constant 4 : i32
    %c0_36 = arith.constant 0 : index
    %c0_37 = arith.constant 0 : index
    %104 = vector.load %arg9[%c0_36, %c0_37] : memref<8x128xf32, #tpu.memory_space<vmem>>, vector<8x128xf32>
    tpu.vector_store %arg9[%c0_36, %c0_37], %103 {strides = array<i32>} : memref<8x128xf32, #tpu.memory_space<vmem>>, vector<8x128xf32>,
    %c0_38 = arith.constant 0 : index
    %c0_39 = arith.constant 0 : index
    %105 = vector.load %arg10[%c0_38, %c0_39] : memref<8x128xf32, #tpu.memory_space<vmem>>, vector<8x128xf32>
    tpu.vector_store %arg10[%c0_38, %c0_39], %101 {strides = array<i32>} : memref<8x128xf32, #tpu.memory_space<vmem>>, vector<8x128xf32>,
    %106 = arith.truncf %103 : vector<8x128xf32> to vector<8x128xbf16>
    %c0_40 = arith.constant 0 : index
    %c0_41 = arith.constant 0 : index
    %107 = vector.load %arg5[%c0_40, %c0_41] : memref<128x128xbf16, #tpu.memory_space<vmem>>, vector<128x128xbf16>
    %cst_42 = arith.constant dense<0.000000e+00> : vector<8x128xf32>
    %108 = tpu.matmul %106, %107, %cst_42 {dimension_numbers = #tpu.dot_dimension_numbers<[1], [0], [0], [1], [0, 0, 1, 1], [], []>} : vector<8x128xbf16>, vector<128x128xbf16>, vector<8x128xf32> -> vector<8x128xf32>
    %c0_43 = arith.constant 0 : index
    %c0_44 = arith.constant 0 : index
    %109 = vector.load %arg6[%c0_43, %c0_44] : memref<1x128xf32, #tpu.memory_space<vmem>>, vector<1x128xf32>
    %110 = vector.broadcast %109 : vector<1x128xf32> to vector<8x128xf32>
    %111 = arith.addf %108, %110 : vector<8x128xf32>
    %c0_45 = arith.constant 0 : index
    %c0_46 = arith.constant 0 : index
    %112 = vector.load %arg7[%c0_45, %c0_46] : memref<8x128xf32, #tpu.memory_space<vmem>>, vector<8x128xf32>
    tpu.vector_store %arg7[%c0_45, %c0_46], %111 {strides = array<i32>} : memref<8x128xf32, #tpu.memory_space<vmem>>, vector<8x128xf32>,
    return
  }
  func.func @transform_0(%arg0: i32) -> (i32, i32) {
    %c0_i32 = arith.constant 0 : i32
    %c0_i32_0 = arith.constant 0 : i32
    return %arg0, %c0_i32 : i32, i32
  }
  func.func @transform_1(%arg0: i32) -> (i32, i32) {
    %c0_i32 = arith.constant 0 : i32
    %c0_i32_0 = arith.constant 0 : i32
    %c0_i32_1 = arith.constant 0 : i32
    return %c0_i32, %c0_i32_0 : i32, i32
  }
  func.func @transform_2(%arg0: i32) -> (i32, i32) {
    %c0_i32 = arith.constant 0 : i32
    %c0_i32_0 = arith.constant 0 : i32
    %c0_i32_1 = arith.constant 0 : i32
    return %c0_i32, %c0_i32_0 : i32, i32
  }
  func.func @transform_3(%arg0: i32) -> (i32, i32) {
    %c0_i32 = arith.constant 0 : i32
    %c0_i32_0 = arith.constant 0 : i32
    %c0_i32_1 = arith.constant 0 : i32
    return %c0_i32, %c0_i32_0 : i32, i32
  }
  func.func @transform_4(%arg0: i32) -> (i32, i32) {
    %c0_i32 = arith.constant 0 : i32
    %c0_i32_0 = arith.constant 0 : i32
    %c0_i32_1 = arith.constant 0 : i32
    return %c0_i32, %c0_i32_0 : i32, i32
  }
  func.func @transform_5(%arg0: i32) -> (i32, i32) {
    %c0_i32 = arith.constant 0 : i32
    %c0_i32_0 = arith.constant 0 : i32
    %c0_i32_1 = arith.constant 0 : i32
    return %c0_i32, %c0_i32_0 : i32, i32
  }
  func.func @transform_6(%arg0: i32) -> (i32, i32) {
    %c0_i32 = arith.constant 0 : i32
    %c0_i32_0 = arith.constant 0 : i32
    %c0_i32_1 = arith.constant 0 : i32
    return %c0_i32, %c0_i32_0 : i32, i32
  }
}

</mosaic_0001>

<llo_original>
// kernel: tpu_custom_call.1
$region0: #{tpu_custom_call.1}
  #allocation0 [shape = 'u32[]', space=smem, size = 0x4, offset = 0x4, fixed_abs, tag = 'smem constant byte address 0x4 - core index']
  #allocation1 [shape = 'u32[72,128]{1,0:T(1,128)}', space=vmem, size = 0x9000, scoped, tag = 'internal scratch']
  #allocation2 [shape = 'f32[32,512]{1,0:T(8,128)}', space=vmem, size = 0x10000, scoped, tag = 'scratch operand']
  #allocation3 [shape = 'f32[8,128]{1,0:T(8,128)}', space=vmem, size = 0x1000, scoped, tag = 'scratch operand']
  #allocation4 [shape = 'f32[8,128]{1,0:T(8,128)}', space=vmem, size = 0x1000, scoped, tag = 'scratch operand']
  %s0 = inlined_call_operand.hbm [shape: bf16[64,64], index: 0, kind: input, shape index: {}]
  %s1 = inlined_call_operand.hbm [shape: bf16[64,512], index: 1, kind: input, shape index: {}]
  %s2 = inlined_call_operand.hbm [shape: bf16[128,512], index: 2, kind: input, shape index: {}]
  %s3 = inlined_call_operand.hbm [shape: f32[1,512], index: 3, kind: input, shape index: {}]
  %s4 = inlined_call_operand.hbm [shape: bf16[128,128], index: 4, kind: input, shape index: {}]
  %s5 = inlined_call_operand.vmem [shape: f32[1,128], index: 5, kind: input, shape index: {}]
  %s6 = inlined_call_operand.hbm [shape: f32[8,128], index: 6, kind: output, shape index: {}]
  %s7 = sld [smem:[#allocation0]]
  $region81: #{tpu_custom_call.1} parent=0
    _
  %s9 = ssub.s32 1, %s7
  %s10 = scalar_select 0, %s9, %s7
  $region1: #{tpu_custom_call.1} parent=0
    #allocation5 [shape = 'u8[16384]{0}', space=vmem, size = 0x4000, scoped, tag = 'input window, operand 0']
    #allocation6 [shape = 's32[2]{0}', space=sflag, size = 0x8, scoped, tag = 'scoped memory for tpu_custom_call.1']
    #allocation7 [shape = 's32[2]{0}', space=sflag, size = 0x8, scoped, tag = 'scoped memory for tpu_custom_call.1']
    #allocation8 [shape = 'u8[65536]{0}', space=vmem, size = 0x10000, scoped, tag = 'input window, operand 1, single buffered']
    #allocation9 [shape = 's32[1]{0}', space=sflag, size = 0x4, scoped, tag = 'scoped memory for tpu_custom_call.1']
    #allocation10 [shape = 'u8[131072]{0}', space=vmem, size = 0x20000, scoped, tag = 'input window, operand 2, single buffered']
    #allocation11 [shape = 'u8[2048]{0}', space=vmem, size = 0x800, scoped, tag = 'input window, operand 3, single buffered']
    #allocation12 [shape = 's32[1]{0}', space=sflag, size = 0x4, scoped, tag = 'scoped memory for tpu_custom_call.1']
    #allocation13 [shape = 'u8[32768]{0}', space=vmem, size = 0x8000, scoped, tag = 'input window, operand 4, single buffered']
    #allocation14 [shape = 'u8[4096]{0}', space=vmem, size = 0x1000, scoped, tag = 'output window, operand 0, single buffered']
    %11 = vsyncpa [#allocation6], 0
    %s12 = scalar_lea.sflag [#allocation6], 1
    %13 = vsyncpa %s12, 0
    %14 = vsyncpa [#allocation9], 0
    %15 = vsyncpa [#allocation12], 0
    %16 = vsyncpa [#allocation7], 0
    loop: start=0, step=1, limit=4
    $region2: #{tpu_custom_call.1} parent=1 // loop_pre_header
      _
    $region3: #{tpu_custom_call.1} parent=1 // loop_header
      %s18 = sphi 0, %s22
      %p19 = scmp.ge.s32.totalorder %s18, 4
      %s28 = sphi 0, %s30
      %s31 = sphi 0, %s28
      %s32 = sphi 0, %s31
      %s48 = sphi 0, %s32
      %s52 = sphi 0, %s52
      %s54 = sphi 0, %s52
      %s55 = sphi 0, %s54
      %s69 = sphi 0, %s55
      %s73 = sphi 0, %s73
      %s75 = sphi 0, %s73
      %s76 = sphi 0, %s75
      %s90 = sphi 0, %s76
      %s94 = sphi 0, %s94
      %s96 = sphi 0, %s94
      %s97 = sphi 0, %s96
      %s111 = sphi 0, %s97
      %s115 = sphi 0, %s115
      %s117 = sphi 0, %s115
      %s118 = sphi 0, %s117
      %s132 = sphi 0, %s118
      %s136 = sphi 0, %s136
      %s138 = sphi 0, %s136
      %s139 = sphi 0, %s138
      %s153 = sphi 0, %s139
      %s157 = sphi 0, %s157
      %s159 = sphi 0, %s157
      %s160 = sphi 0, %s159
      %s174 = sphi 0, %s160
    $region4: #{tpu_custom_call.1} parent=1 // loop_header_branch
      %21 = sbr.rel (%p19) target = $region8
    $region5: #{tpu_custom_call.1} parent=1 // loop_body
      %s23 = ssub.s32 %s18, 1
      %s24 = ssub.s32 %s18, 2
      %s25 = sadd.s32 %s18, 1
      %s26 = ssub.s32 %s18, %s25
      %p27 = scmp.eq.s32.totalorder %s26, 0
      %s29 = sadd.s32 %s28, 1
      %s30 = scalar_select %p27, %s28, %s29
      %p33 = pneg %p27
      %p34 = scmp.eq.s32.totalorder %s18, 1
      %p35 = por %p33, %p34
      %p36 = scmp.ne.s32.totalorder %s28, %s31
      %p37 = scmp.eq.s32.totalorder %s18, 0
      %p38 = por %p36, %p37
      %p39 = scmp.ne.s32.totalorder %s28, %s31
      %p40 = scmp.eq.s32.totalorder %s23, 1
      %p41 = por %p39, %p40
      %p42 = scmp.ne.s32.totalorder %s31, %s32
      %p43 = scmp.eq.s32.totalorder %s23, 0
      %p44 = por %p42, %p43
      %p45 = scmp.ne.s32.totalorder %s31, %s32
      %p46 = scmp.eq.s32.totalorder %s24, 1
      %p47 = por %p45, %p46
      %p49 = scmp.ne.s32.totalorder %s32, %s48
      %p50 = scmp.eq.s32.totalorder %s24, 0
      %p51 = por %p49, %p50
      %s53 = sadd.s32 %s52, 1
      %p56 = scmp.eq.s32.totalorder %s18, 1
      %p57 = scmp.ne.s32.totalorder %s52, %s54
      %p58 = scmp.eq.s32.totalorder %s18, 0
      %p59 = por %p57, %p58
      %p60 = scmp.ne.s32.totalorder %s52, %s54
      %p61 = scmp.eq.s32.totalorder %s23, 1
      %p62 = por %p60, %p61
      %p63 = scmp.ne.s32.totalorder %s54, %s55
      %p64 = scmp.eq.s32.totalorder %s23, 0
      %p65 = por %p63, %p64
      %p66 = scmp.ne.s32.totalorder %s54, %s55
      %p67 = scmp.eq.s32.totalorder %s24, 1
      %p68 = por %p66, %p67
      %p70 = scmp.ne.s32.totalorder %s55, %s69
      %p71 = scmp.eq.s32.totalorder %s24, 0
      %p72 = por %p70, %p71
      %s74 = sadd.s32 %s73, 1
      %p77 = scmp.eq.s32.totalorder %s18, 1
      %p78 = scmp.ne.s32.totalorder %s73, %s75
      %p79 = scmp.eq.s32.totalorder %s18, 0
      %p80 = por %p78, %p79
      %p81 = scmp.ne.s32.totalorder %s73, %s75
      %p82 = scmp.eq.s32.totalorder %s23, 1
      %p83 = por %p81, %p82
      %p84 = scmp.ne.s32.totalorder %s75, %s76
      %p85 = scmp.eq.s32.totalorder %s23, 0
      %p86 = por %p84, %p85
      %p87 = scmp.ne.s32.totalorder %s75, %s76
      %p88 = scmp.eq.s32.totalorder %s24, 1
      %p89 = por %p87, %p88
      %p91 = scmp.ne.s32.totalorder %s76, %s90
      %p92 = scmp.eq.s32.totalorder %s24, 0
      %p93 = por %p91, %p92
      %s95 = sadd.s32 %s94, 1
      %p98 = scmp.eq.s32.totalorder %s18, 1
      %p99 = scmp.ne.s32.totalorder %s94, %s96
      %p100 = scmp.eq.s32.totalorder %s18, 0
      %p101 = por %p99, %p100
      %p102 = scmp.ne.s32.totalorder %s94, %s96
      %p103 = scmp.eq.s32.totalorder %s23, 1
      %p104 = por %p102, %p103
      %p105 = scmp.ne.s32.totalorder %s96, %s97
      %p106 = scmp.eq.s32.totalorder %s23, 0
      %p107 = por %p105, %p106
      %p108 = scmp.ne.s32.totalorder %s96, %s97
      %p109 = scmp.eq.s32.totalorder %s24, 1
      %p110 = por %p108, %p109
      %p112 = scmp.ne.s32.totalorder %s97, %s111
      %p113 = scmp.eq.s32.totalorder %s24, 0
      %p114 = por %p112, %p113
      %s116 = sadd.s32 %s115, 1
      %p119 = scmp.eq.s32.totalorder %s18, 1
      %p120 = scmp.ne.s32.totalorder %s115, %s117
      %p121 = scmp.eq.s32.totalorder %s18, 0
      %p122 = por %p120, %p121
      %p123 = scmp.ne.s32.totalorder %s115, %s117
      %p124 = scmp.eq.s32.totalorder %s23, 1
      %p125 = por %p123, %p124
      %p126 = scmp.ne.s32.totalorder %s117, %s118
      %p127 = scmp.eq.s32.totalorder %s23, 0
      %p128 = por %p126, %p127
      %p129 = scmp.ne.s32.totalorder %s117, %s118
      %p130 = scmp.eq.s32.totalorder %s24, 1
      %p131 = por %p129, %p130
      %p133 = scmp.ne.s32.totalorder %s118, %s132
      %p134 = scmp.eq.s32.totalorder %s24, 0
      %p135 = por %p133, %p134
      %s137 = sadd.s32 %s136, 1
      %p140 = scmp.eq.s32.totalorder %s18, 1
      %p141 = scmp.ne.s32.totalorder %s136, %s138
      %p142 = scmp.eq.s32.totalorder %s18, 0
      %p143 = por %p141, %p142
      %p144 = scmp.ne.s32.totalorder %s136, %s138
      %p145 = scmp.eq.s32.totalorder %s23, 1
      %p146 = por %p144, %p145
      %p147 = scmp.ne.s32.totalorder %s138, %s139
      %p148 = scmp.eq.s32.totalorder %s23, 0
      %p149 = por %p147, %p148
      %p150 = scmp.ne.s32.totalorder %s138, %s139
      %p151 = scmp.eq.s32.totalorder %s24, 1
      %p152 = por %p150, %p151
      %p154 = scmp.ne.s32.totalorder %s139, %s153
      %p155 = scmp.eq.s32.totalorder %s24, 0
      %p156 = por %p154, %p155
      %s158 = sadd.s32 %s157, 1
      %p161 = scmp.eq.s32.totalorder %s18, 1
      %p162 = scmp.ne.s32.totalorder %s157, %s159
      %p163 = scmp.eq.s32.totalorder %s18, 0
      %p164 = por %p162, %p163
      %p165 = scmp.ne.s32.totalorder %s157, %s159
      %p166 = scmp.eq.s32.totalorder %s23, 1
      %p167 = por %p165, %p166
      %p168 = scmp.ne.s32.totalorder %s159, %s160
      %p169 = scmp.eq.s32.totalorder %s23, 0
      %p170 = por %p168, %p169
      %p171 = scmp.ne.s32.totalorder %s159, %s160
      %p172 = scmp.eq.s32.totalorder %s24, 1
      %p173 = por %p171, %p172
      %p175 = scmp.ne.s32.totalorder %s160, %s174
      %p176 = scmp.eq.s32.totalorder %s24, 0
      %p177 = por %p175, %p176
      %p178 = scmp.le.s32.totalorder 1, %s18
      %p179 = scmp.lt.s32.totalorder %s18, 3
      %p180 = pnand %p178, %p179
      %p181 = pneg %p180
      // Predicated region
      $region9: #{tpu_custom_call.1} parent=5 // pred_check
        _
      $region10: #{tpu_custom_call.1} parent=5 // pred_check_branch
        %183 = sbr.rel (%p180) target = $region12
      $region11: #{tpu_custom_call.1} parent=5 // pred_region
        %s184 = ssub.s32 %s18, 1
        // Predicated region
        $region13: #{tpu_custom_call.1} parent=11 // pred_check
          %p185 = pneg %p65
        $region14: #{tpu_custom_call.1} parent=11 // pred_check_branch
          %187 = sbr.rel (%p185) target = $region16
        $region15: #{tpu_custom_call.1} parent=11 // pred_region
          %189 = vsyncadd [#allocation9], 0
          %s190 = sshll.u32 %s1, 4
          %s191 = int_to_ptr.hbm [resolvable:$true] %s190
          %s192 = sshll.u32 [#allocation8], 4
          %s193 = int_to_ptr.vmem [resolvable:$true] %s192
          %198 = dma.hbm_to_vmem [thread:$0]  %s191, 2048, %s193, [#allocation9], 256, 256, 16
        $region16: #{tpu_custom_call.1} parent=11 // pred_fallthru
          _
        // Predicated region
        $region17: #{tpu_custom_call.1} parent=11 // pred_check
          %p199 = pneg %p86
        $region18: #{tpu_custom_call.1} parent=11 // pred_check_branch
          %201 = sbr.rel (%p199) target = $region20
        $region19: #{tpu_custom_call.1} parent=11 // pred_region
          %203 = vsyncadd [#allocation9], 0
          %s204 = sshll.u32 %s2, 4
          %s205 = int_to_ptr.hbm [resolvable:$true] %s204
          %s206 = sshll.u32 [#allocation10], 4
          %s207 = int_to_ptr.vmem [resolvable:$true] %s206
          %212 = dma.hbm_to_vmem [thread:$0]  %s205, 4096, %s207, [#allocation9], 256, 256, 16
        $region20: #{tpu_custom_call.1} parent=11 // pred_fallthru
          _
        // Predicated region
        $region21: #{tpu_custom_call.1} parent=11 // pred_check
          %p213 = pneg %p107
        $region22: #{tpu_custom_call.1} parent=11 // pred_check_branch
          %215 = sbr.rel (%p213) target = $region24
        $region23: #{tpu_custom_call.1} parent=11 // pred_region
          %217 = vsyncadd [#allocation12], 0
          %s219 = sshll.u32 %s3, 4
          %s220 = int_to_ptr.hbm [resolvable:$true] %s219
          %s221 = sshll.u32 [#allocation11], 4
          %s222 = int_to_ptr.vmem [resolvable:$true] %s221
          %224 = dma.hbm_to_vmem [thread:$0]  %s220, 64, %s222, [#allocation12]
        $region24: #{tpu_custom_call.1} parent=11 // pred_fallthru
          _
        // Predicated region
        $region25: #{tpu_custom_call.1} parent=11 // pred_check
          %p225 = pneg %p128
        $region26: #{tpu_custom_call.1} parent=11 // pred_check_branch
          %227 = sbr.rel (%p225) target = $region28
        $region27: #{tpu_custom_call.1} parent=11 // pred_region
          %229 = vsyncadd [#allocation12], 0
          %s230 = sshll.u32 %s4, 4
          %s231 = int_to_ptr.hbm [resolvable:$true] %s230
          %s232 = sshll.u32 [#allocation13], 4
          %s233 = int_to_ptr.vmem [resolvable:$true] %s232
          %238 = dma.hbm_to_vmem [thread:$0]  %s231, 1024, %s233, [#allocation12], 64, 64, 4
        $region28: #{tpu_custom_call.1} parent=11 // pred_fallthru
          _
        // Predicated region
        $region29: #{tpu_custom_call.1} parent=11 // pred_check
          %p239 = pneg %p149
        $region30: #{tpu_custom_call.1} parent=11 // pred_check_branch
          %241 = sbr.rel (%p239) target = $region32
        $region31: #{tpu_custom_call.1} parent=11 // pred_region
          _
        $region32: #{tpu_custom_call.1} parent=11 // pred_fallthru
          _
      $region12: #{tpu_custom_call.1} parent=5 // pred_fallthru
        _
      %p242 = scmp.lt.s32.totalorder %s18, 2
      // Predicated region
      $region33: #{tpu_custom_call.1} parent=5 // pred_check
        %p243 = pneg %p242
      $region34: #{tpu_custom_call.1} parent=5 // pred_check_branch
        %245 = sbr.rel (%p243) target = $region36
      $region35: #{tpu_custom_call.1} parent=5 // pred_region
        // Predicated region
        $region37: #{tpu_custom_call.1} parent=35 // pred_check
          %p246 = pneg %p38
        $region38: #{tpu_custom_call.1} parent=35 // pred_check_branch
          %248 = sbr.rel (%p246) target = $region40
        $region39: #{tpu_custom_call.1} parent=35 // pred_region
          %s249 = sand.u32 %s28, 1
          %s250 = scalar_lea.sflag [#allocation6], %s249
          %s251 = sand.u32 %s28, 1
          %s252 = smul.addr %s251, 16
          %s253 = scalar_lea.vmem [#allocation5], %s252
          %s254 = smul.u32 4, %s18
          %256 = vsyncadd %s250, 0
          %s257 = smul.addr %s254, 4
          %s258 = scalar_lea.hbm %s0, %s257
          %s259 = sshll.u32 %s258, 4
          %s260 = int_to_ptr.hbm [resolvable:$true] %s259
          %s261 = sshll.u32 %s253, 4
          %s262 = int_to_ptr.vmem [resolvable:$true] %s261
          %267 = dma.hbm_to_vmem [thread:$0]  %s260, 256, %s262, %s250, 64, 64, 4
        $region40: #{tpu_custom_call.1} parent=35 // pred_fallthru
          _
      $region36: #{tpu_custom_call.1} parent=5 // pred_fallthru
        _
      %p268 = scmp.le.s32.totalorder 1, %s18
      %p269 = scmp.lt.s32.totalorder %s18, 3
      %p270 = pnand %p268, %p269
      %p271 = pneg %p270
      // Predicated region
      $region41: #{tpu_custom_call.1} parent=5 // pred_check
        _
      $region42: #{tpu_custom_call.1} parent=5 // pred_check_branch
        %273 = sbr.rel (%p270) target = $region44
      $region43: #{tpu_custom_call.1} parent=5 // pred_region
        %s274 = ssub.s32 %s18, 1
        %s275 = sand.u32 %s31, 1
        %s276 = scalar_lea.sflag [#allocation6], %s275
        %s277 = sand.u32 %s31, 1
        %s278 = smul.addr %s277, 16
        %s279 = scalar_lea.vmem [#allocation5], %s278
        // Predicated region
        $region45: #{tpu_custom_call.1} parent=43 // pred_check
          %p280 = pneg %p44
        $region46: #{tpu_custom_call.1} parent=43 // pred_check_branch
          %282 = sbr.rel (%p280) target = $region48
        $region47: #{tpu_custom_call.1} parent=43 // pred_region
          %284 = dma.done %s276, 256
        $region48: #{tpu_custom_call.1} parent=43 // pred_fallthru
          _
        // Predicated region
        $region49: #{tpu_custom_call.1} parent=43 // pred_check
          %p285 = pneg %p65
        $region50: #{tpu_custom_call.1} parent=43 // pred_check_branch
          %287 = sbr.rel (%p285) target = $region52
        $region51: #{tpu_custom_call.1} parent=43 // pred_region
          %289 = dma.done [#allocation9], 2048
        $region52: #{tpu_custom_call.1} parent=43 // pred_fallthru
          _
        // Predicated region
        $region53: #{tpu_custom_call.1} parent=43 // pred_check
          %p290 = pneg %p86
        $region54: #{tpu_custom_call.1} parent=43 // pred_check_branch
          %292 = sbr.rel (%p290) target = $region56
        $region55: #{tpu_custom_call.1} parent=43 // pred_region
          %294 = dma.done [#allocation9], 4096
        $region56: #{tpu_custom_call.1} parent=43 // pred_fallthru
          _
        // Predicated region
        $region57: #{tpu_custom_call.1} parent=43 // pred_check
          %p295 = pneg %p107
        $region58: #{tpu_custom_call.1} parent=43 // pred_check_branch
          %297 = sbr.rel (%p295) target = $region60
        $region59: #{tpu_custom_call.1} parent=43 // pred_region
          %299 = dma.done [#allocation12], 64
        $region60: #{tpu_custom_call.1} parent=43 // pred_fallthru
          _
        // Predicated region
        $region61: #{tpu_custom_call.1} parent=43 // pred_check
          %p300 = pneg %p128
        $region62: #{tpu_custom_call.1} parent=43 // pred_check_branch
          %302 = sbr.rel (%p300) target = $region64
        $region63: #{tpu_custom_call.1} parent=43 // pred_region
          %304 = dma.done [#allocation12], 1024
        $region64: #{tpu_custom_call.1} parent=43 // pred_fallthru
          _
        %s305 = sand.u32 %s31, 1
        %s306 = scalar_lea.sflag [#allocation6], %s305
        %s307 = sand.u32 %s31, 1
        %s308 = smul.addr %s307, 16
        %s309 = scalar_lea.vmem [#allocation5], %s308
        %p310 = pneg %p44
        %p311 = pneg %p41
        %p312 = pneg %p65
        %p313 = pneg %p62
        %p314 = pneg %p86
        %p315 = pneg %p83
        %p316 = pneg %p107
        %p317 = pneg %p104
        %p318 = pneg %p128
        %p319 = pneg %p125
        %p320 = pneg %p149
        %p321 = pneg %p146
        %p322 = pneg %p170
        %p323 = pneg %p167
        %s324 = smul.u32 4, %s23
        %p326 = scmp.eq.s32.totalorder %s23, 0
        // Predicated region
        $region65: #{tpu_custom_call.1} parent=43 // pred_check
          %p327 = pneg %p326
        $region66: #{tpu_custom_call.1} parent=43 // pred_check_branch
          %329 = sbr.rel (%p327) target = $region68
        $region67: #{tpu_custom_call.1} parent=43 // pred_region
          %330 = vst [vmem:[#allocation3] sm:$0xff] 0.0
          %331 = vst [vmem:[#allocation4] sm:$0xff] 0.0
        $region68: #{tpu_custom_call.1} parent=43 // pred_fallthru
          _
        %v332 = vld [vmem:[%s279] sm:$0xf]
        %v333 = vld [vmem:[%s279 + $0x4] sm:$0xf]
        %v334 = vld [vmem:[%s279 + $0x8] sm:$0xf]
        %v335 = vld [vmem:[%s279 + $0xc] sm:$0xf]
        %v336 = vld [vmem:[#allocation8] sm:$0xff]
        %v337 = vld [vmem:[#allocation8 + $0x8] sm:$0xff]
        %v338 = vld [vmem:[#allocation8 + $0x10] sm:$0xff]
        %v339 = vld [vmem:[#allocation8 + $0x18] sm:$0xff]
        %v340 = vld [vmem:[#allocation8 + $0x20] sm:$0xff]
        %v341 = vld [vmem:[#allocation8 + $0x28] sm:$0xff]
        %v342 = vld [vmem:[#allocation8 + $0x30] sm:$0xff]
        %v343 = vld [vmem:[#allocation8 + $0x38] sm:$0xff]
        %v344 = vld [vmem:[#allocation8 + $0x40] sm:$0xff]
        %v345 = vld [vmem:[#allocation8 + $0x48] sm:$0xff]
        %v346 = vld [vmem:[#allocation8 + $0x50] sm:$0xff]
        %v347 = vld [vmem:[#allocation8 + $0x58] sm:$0xff]
        %v348 = vld [vmem:[#allocation8 + $0x60] sm:$0xff]
        %v349 = vld [vmem:[#allocation8 + $0x68] sm:$0xff]
        %v350 = vld [vmem:[#allocation8 + $0x70] sm:$0xff]
        %v351 = vld [vmem:[#allocation8 + $0x78] sm:$0xff]
        %v352 = vld [vmem:[#allocation11] sm:$0xf]
        %v354 = vperm.slane %v352, 0
        %v355 = vperm.slane %v352, 1
        %v356 = vperm.slane %v352, 2
        %v357 = vperm.slane %v352, 3
        %v366 = vunpack.c.l.b16 %v332
        %v367 = vunpack.c.l.b16 %v333
        %v368 = vunpack.c.l.b16 %v334
        %v369 = vunpack.c.l.b16 %v335
        %v370 = vpack.c.b16 %v367, %v366
        %v371 = vpack.c.b16 %v369, %v368
        %v388 = vunpack.c.l.b16 %v336
        %v389 = vunpack.c.h.b16 %v336
        %v390 = vunpack.c.l.b16 %v337
        %v391 = vunpack.c.h.b16 %v337
        %v392 = vunpack.c.l.b16 %v338
        %v393 = vunpack.c.h.b16 %v338
        %v394 = vunpack.c.l.b16 %v339
        %v395 = vunpack.c.h.b16 %v339
        %v396 = vunpack.c.l.b16 %v340
        %v397 = vunpack.c.h.b16 %v340
        %v398 = vunpack.c.l.b16 %v341
        %v399 = vunpack.c.h.b16 %v341
        %v400 = vunpack.c.l.b16 %v342
        %v401 = vunpack.c.h.b16 %v342
        %v402 = vunpack.c.l.b16 %v343
        %v403 = vunpack.c.h.b16 %v343
        %v404 = vunpack.c.l.b16 %v344
        %v405 = vunpack.c.h.b16 %v344
        %v406 = vunpack.c.l.b16 %v345
        %v407 = vunpack.c.h.b16 %v345
        %v408 = vunpack.c.l.b16 %v346
        %v409 = vunpack.c.h.b16 %v346
        %v410 = vunpack.c.l.b16 %v347
        %v411 = vunpack.c.h.b16 %v347
        %v412 = vunpack.c.l.b16 %v348
        %v413 = vunpack.c.h.b16 %v348
        %v414 = vunpack.c.l.b16 %v349
        %v415 = vunpack.c.h.b16 %v349
        %v416 = vunpack.c.l.b16 %v350
        %v417 = vunpack.c.h.b16 %v350
        %v418 = vunpack.c.l.b16 %v351
        %v419 = vunpack.c.h.b16 %v351
        %v420 = vpack.c.b16 %v392, %v388
        %v421 = vpack.c.b16 %v393, %v389
        %v422 = vpack.c.b16 %v394, %v390
        %v423 = vpack.c.b16 %v395, %v391
        %v424 = vpack.c.b16 %v400, %v396
        %v425 = vpack.c.b16 %v401, %v397
        %v426 = vpack.c.b16 %v402, %v398
        %v427 = vpack.c.b16 %v403, %v399
        %v428 = vpack.c.b16 %v408, %v404
        %v429 = vpack.c.b16 %v409, %v405
        %v430 = vpack.c.b16 %v410, %v406
        %v431 = vpack.c.b16 %v411, %v407
        %v432 = vpack.c.b16 %v416, %v412
        %v433 = vpack.c.b16 %v417, %v413
        %v434 = vpack.c.b16 %v418, %v414
        %v435 = vpack.c.b16 %v419, %v415
        %vm452 = vcmask 523264
        %v454 = vsel %vm452, %v370, 0
        %v457 = vsel %vm452, %v371, 0
        %459 = vmatpush.bf16.msra.mxu0 0
        %460 = vmatpush.bf16.msra.mxu0 0
        %461 = vmatpush.bf16.msra.mxu0 0
        %462 = vmatpush.bf16.msra.mxu0 0
        %463 = vmatpush.bf16.msra.mxu0 %v432
        %464 = vmatpush.bf16.msra.mxu0 %v428
        %465 = vmatpush.bf16.msra.mxu0 %v424
        %466 = vmatpush.bf16.msra.mxu0 %v420
        %467 = vmatmul.bf16.gmra.mxu0 %v454
        %v468 = vpop.f32.mrf.mxu0
        %v469 = vadd.f32 %v354, %v468
        %v470 = vpop.f32.mrf.mxu0
        %v471 = vadd.f32 %v354, %v470
        %472 = vmatmul.bf16.gmra.mxu0 %v457
        %v473 = vpop.f32.mrf.mxu0
        %v474 = vadd.f32 %v354, %v473
        %v475 = vpop.f32.mrf.mxu0
        %v476 = vadd.f32 %v354, %v475
        %477 = vdwg.mxu0
        %478 = vmatpush.bf16.msra.mxu0 0
        %479 = vmatpush.bf16.msra.mxu0 0
        %480 = vmatpush.bf16.msra.mxu0 0
        %481 = vmatpush.bf16.msra.mxu0 0
        %482 = vmatpush.bf16.msra.mxu0 %v433
        %483 = vmatpush.bf16.msra.mxu0 %v429
        %484 = vmatpush.bf16.msra.mxu0 %v425
        %485 = vmatpush.bf16.msra.mxu0 %v421
        %486 = vmatmul.bf16.gmra.mxu0 %v454
        %v487 = vpop.f32.mrf.mxu0
        %v488 = vadd.f32 %v355, %v487
        %v489 = vpop.f32.mrf.mxu0
        %v490 = vadd.f32 %v355, %v489
        %491 = vmatmul.bf16.gmra.mxu0 %v457
        %v492 = vpop.f32.mrf.mxu0
        %v493 = vadd.f32 %v355, %v492
        %v494 = vpop.f32.mrf.mxu0
        %v495 = vadd.f32 %v355, %v494
        %496 = vdwg.mxu0
        %497 = vmatpush.bf16.msra.mxu0 0
        %498 = vmatpush.bf16.msra.mxu0 0
        %499 = vmatpush.bf16.msra.mxu0 0
        %500 = vmatpush.bf16.msra.mxu0 0
        %501 = vmatpush.bf16.msra.mxu0 %v434
        %502 = vmatpush.bf16.msra.mxu0 %v430
        %503 = vmatpush.bf16.msra.mxu0 %v426
        %504 = vmatpush.bf16.msra.mxu0 %v422
        %505 = vmatmul.bf16.gmra.mxu0 %v454
        %v506 = vpop.f32.mrf.mxu0
        %v507 = vadd.f32 %v356, %v506
        %v508 = vpop.f32.mrf.mxu0
        %v509 = vadd.f32 %v356, %v508
        %510 = vmatmul.bf16.gmra.mxu0 %v457
        %v511 = vpop.f32.mrf.mxu0
        %v512 = vadd.f32 %v356, %v511
        %v513 = vpop.f32.mrf.mxu0
        %v514 = vadd.f32 %v356, %v513
        %515 = vdwg.mxu0
        %516 = vmatpush.bf16.msra.mxu0 0
        %517 = vmatpush.bf16.msra.mxu0 0
        %518 = vmatpush.bf16.msra.mxu0 0
        %519 = vmatpush.bf16.msra.mxu0 0
        %520 = vmatpush.bf16.msra.mxu0 %v435
        %521 = vmatpush.bf16.msra.mxu0 %v431
        %522 = vmatpush.bf16.msra.mxu0 %v427
        %523 = vmatpush.bf16.msra.mxu0 %v423
        %524 = vmatmul.bf16.gmra.mxu0 %v454
        %v525 = vpop.f32.mrf.mxu0
        %v526 = vadd.f32 %v357, %v525
        %v527 = vpop.f32.mrf.mxu0
        %v528 = vadd.f32 %v357, %v527
        %529 = vmatmul.bf16.gmra.mxu0 %v457
        %v530 = vpop.f32.mrf.mxu0
        %v531 = vadd.f32 %v357, %v530
        %v532 = vpop.f32.mrf.mxu0
        %v533 = vadd.f32 %v357, %v532
        %534 = vdwg.mxu0
        %535 = vst [vmem:[#allocation2] sm:$0xff] %v469
        %536 = vst [vmem:[#allocation2 + $0x8] sm:$0xff] %v488
        %537 = vst [vmem:[#allocation2 + $0x10] sm:$0xff] %v507
        %538 = vst [vmem:[#allocation2 + $0x18] sm:$0xff] %v526
        %539 = vst [vmem:[#allocation2 + $0x20] sm:$0xff] %v471
        %540 = vst [vmem:[#allocation2 + $0x28] sm:$0xff] %v490
        %541 = vst [vmem:[#allocation2 + $0x30] sm:$0xff] %v509
        %542 = vst [vmem:[#allocation2 + $0x38] sm:$0xff] %v528
        %543 = vst [vmem:[#allocation2 + $0x40] sm:$0xff] %v474
        %544 = vst [vmem:[#allocation2 + $0x48] sm:$0xff] %v493
        %545 = vst [vmem:[#allocation2 + $0x50] sm:$0xff] %v512
        %546 = vst [vmem:[#allocation2 + $0x58] sm:$0xff] %v531
        %547 = vst [vmem:[#allocation2 + $0x60] sm:$0xff] %v476
        %548 = vst [vmem:[#allocation2 + $0x68] sm:$0xff] %v495
        %549 = vst [vmem:[#allocation2 + $0x70] sm:$0xff] %v514
        %550 = vst [vmem:[#allocation2 + $0x78] sm:$0xff] %v533
        %v551 = vlaneseq
        %v552 = vand.u32 %v551, 127
        %v553 = vadd.s32 %v552, 128
        %v554 = vadd.s32 %v552, 256
        %v555 = vadd.s32 %v552, 384
        %vm556 = vcmp.ge.s32.totalorder %v552, 256
        %vm557 = vcmp.ge.s32.totalorder %v553, 256
        %vm558 = vcmp.ge.s32.totalorder %v554, 256
        %vm559 = vcmp.ge.s32.totalorder %v555, 256
        %vm560 = vcmp.lt.s32.totalorder %v552, 384
        %vm561 = vcmp.lt.s32.totalorder %v553, 384
        %vm562 = vcmp.lt.s32.totalorder %v554, 384
        %vm563 = vcmp.lt.s32.totalorder %v555, 384
        %vm564 = vmand %vm556, %vm560
        %vm565 = vmand %vm557, %vm561
        %vm566 = vmand %vm558, %vm562
        %vm567 = vmand %vm559, %vm563
        %v568 = vsel %vm564, 1.0, 0.5
        %v569 = vsel %vm565, 1.0, 0.5
        %v570 = vsel %vm566, 1.0, 0.5
        %v571 = vsel %vm567, 1.0, 0.5
        %v572 = vsel %vm564, 0.0, 0.5
        %v573 = vsel %vm565, 0.0, 0.5
        %v574 = vsel %vm566, 0.0, 0.5
        %v575 = vsel %vm567, 0.0, 0.5
        %v576 = vld [vmem:[#allocation3] sm:$0xff]
        %v577 = vld [vmem:[#allocation4] sm:$0xff]
        %s578 = smul.u32 0, 4
        %s579 = smul.addr %s578, 8
        %s580 = scalar_lea.vmem [#allocation2], %s579
        %v581 = vld [vmem:[%s580] sm:$0xff]
        %v582 = vld [vmem:[%s580 + $0x8] sm:$0xff]
        %v583 = vld [vmem:[%s580 + $0x10] sm:$0xff]
        %v584 = vld [vmem:[%s580 + $0x18] sm:$0xff]
        %v585 = vpack.c.bf16 %v576, %v576
        %v586 = vld [vmem:[#allocation10] sm:$0xff]
        %v587 = vld [vmem:[#allocation10 + $0x8] sm:$0xff]
        %v588 = vld [vmem:[#allocation10 + $0x10] sm:$0xff]
        %v589 = vld [vmem:[#allocation10 + $0x18] sm:$0xff]
        %v590 = vld [vmem:[#allocation10 + $0x20] sm:$0xff]
        %v591 = vld [vmem:[#allocation10 + $0x28] sm:$0xff]
        %v592 = vld [vmem:[#allocation10 + $0x30] sm:$0xff]
        %v593 = vld [vmem:[#allocation10 + $0x38] sm:$0xff]
        %v594 = vld [vmem:[#allocation10 + $0x40] sm:$0xff]
        %v595 = vld [vmem:[#allocation10 + $0x48] sm:$0xff]
        %v596 = vld [vmem:[#allocation10 + $0x50] sm:$0xff]
        %v597 = vld [vmem:[#allocation10 + $0x58] sm:$0xff]
        %v598 = vld [vmem:[#allocation10 + $0x60] sm:$0xff]
        %v599 = vld [vmem:[#allocation10 + $0x68] sm:$0xff]
        %v600 = vld [vmem:[#allocation10 + $0x70] sm:$0xff]
        %v601 = vld [vmem:[#allocation10 + $0x78] sm:$0xff]
        %v602 = vld [vmem:[#allocation10 + $0x80] sm:$0xff]
        %v603 = vld [vmem:[#allocation10 + $0x88] sm:$0xff]
        %v604 = vld [vmem:[#allocation10 + $0x90] sm:$0xff]
        %v605 = vld [vmem:[#allocation10 + $0x98] sm:$0xff]
        %v606 = vld [vmem:[#allocation10 + $0xa0] sm:$0xff]
        %v607 = vld [vmem:[#allocation10 + $0xa8] sm:$0xff]
        %v608 = vld [vmem:[#allocation10 + $0xb0] sm:$0xff]
        %v609 = vld [vmem:[#allocation10 + $0xb8] sm:$0xff]
        %v610 = vld [vmem:[#allocation10 + $0xc0] sm:$0xff]
        %v611 = vld [vmem:[#allocation10 + $0xc8] sm:$0xff]
        %v612 = vld [vmem:[#allocation10 + $0xd0] sm:$0xff]
        %v613 = vld [vmem:[#allocation10 + $0xd8] sm:$0xff]
        %v614 = vld [vmem:[#allocation10 + $0xe0] sm:$0xff]
        %v615 = vld [vmem:[#allocation10 + $0xe8] sm:$0xff]
        %v616 = vld [vmem:[#allocation10 + $0xf0] sm:$0xff]
        %v617 = vld [vmem:[#allocation10 + $0xf8] sm:$0xff]
        %v650 = vunpack.c.l.b16 %v586
        %v651 = vunpack.c.h.b16 %v586
        %v652 = vunpack.c.l.b16 %v587
        %v653 = vunpack.c.h.b16 %v587
        %v654 = vunpack.c.l.b16 %v588
        %v655 = vunpack.c.h.b16 %v588
        %v656 = vunpack.c.l.b16 %v589
        %v657 = vunpack.c.h.b16 %v589
        %v658 = vunpack.c.l.b16 %v590
        %v659 = vunpack.c.h.b16 %v590
        %v660 = vunpack.c.l.b16 %v591
        %v661 = vunpack.c.h.b16 %v591
        %v662 = vunpack.c.l.b16 %v592
        %v663 = vunpack.c.h.b16 %v592
        %v664 = vunpack.c.l.b16 %v593
        %v665 = vunpack.c.h.b16 %v593
        %v666 = vunpack.c.l.b16 %v594
        %v667 = vunpack.c.h.b16 %v594
        %v668 = vunpack.c.l.b16 %v595
        %v669 = vunpack.c.h.b16 %v595
        %v670 = vunpack.c.l.b16 %v596
        %v671 = vunpack.c.h.b16 %v596
        %v672 = vunpack.c.l.b16 %v597
        %v673 = vunpack.c.h.b16 %v597
        %v674 = vunpack.c.l.b16 %v598
        %v675 = vunpack.c.h.b16 %v598
        %v676 = vunpack.c.l.b16 %v599
        %v677 = vunpack.c.h.b16 %v599
        %v678 = vunpack.c.l.b16 %v600
        %v679 = vunpack.c.h.b16 %v600
        %v680 = vunpack.c.l.b16 %v601
        %v681 = vunpack.c.h.b16 %v601
        %v682 = vunpack.c.l.b16 %v602
        %v683 = vunpack.c.h.b16 %v602
        %v684 = vunpack.c.l.b16 %v603
        %v685 = vunpack.c.h.b16 %v603
        %v686 = vunpack.c.l.b16 %v604
        %v687 = vunpack.c.h.b16 %v604
        %v688 = vunpack.c.l.b16 %v605
        %v689 = vunpack.c.h.b16 %v605
        %v690 = vunpack.c.l.b16 %v606
        %v691 = vunpack.c.h.b16 %v606
        %v692 = vunpack.c.l.b16 %v607
        %v693 = vunpack.c.h.b16 %v607
        %v694 = vunpack.c.l.b16 %v608
        %v695 = vunpack.c.h.b16 %v608
        %v696 = vunpack.c.l.b16 %v609
        %v697 = vunpack.c.h.b16 %v609
        %v698 = vunpack.c.l.b16 %v610
        %v699 = vunpack.c.h.b16 %v610
        %v700 = vunpack.c.l.b16 %v611
        %v701 = vunpack.c.h.b16 %v611
        %v702 = vunpack.c.l.b16 %v612
        %v703 = vunpack.c.h.b16 %v612
        %v704 = vunpack.c.l.b16 %v613
        %v705 = vunpack.c.h.b16 %v613
        %v706 = vunpack.c.l.b16 %v614
        %v707 = vunpack.c.h.b16 %v614
        %v708 = vunpack.c.l.b16 %v615
        %v709 = vunpack.c.h.b16 %v615
        %v710 = vunpack.c.l.b16 %v616
        %v711 = vunpack.c.h.b16 %v616
        %v712 = vunpack.c.l.b16 %v617
        %v713 = vunpack.c.h.b16 %v617
        %v714 = vpack.c.b16 %v654, %v650
        %v715 = vpack.c.b16 %v655, %v651
        %v716 = vpack.c.b16 %v656, %v652
        %v717 = vpack.c.b16 %v657, %v653
        %v718 = vpack.c.b16 %v662, %v658
        %v719 = vpack.c.b16 %v663, %v659
        %v720 = vpack.c.b16 %v664, %v660
        %v721 = vpack.c.b16 %v665, %v661
        %v722 = vpack.c.b16 %v670, %v666
        %v723 = vpack.c.b16 %v671, %v667
        %v724 = vpack.c.b16 %v672, %v668
        %v725 = vpack.c.b16 %v673, %v669
        %v726 = vpack.c.b16 %v678, %v674
        %v727 = vpack.c.b16 %v679, %v675
        %v728 = vpack.c.b16 %v680, %v676
        %v729 = vpack.c.b16 %v681, %v677
        %v730 = vpack.c.b16 %v686, %v682
        %v731 = vpack.c.b16 %v687, %v683
        %v732 = vpack.c.b16 %v688, %v684
        %v733 = vpack.c.b16 %v689, %v685
        %v734 = vpack.c.b16 %v694, %v690
        %v735 = vpack.c.b16 %v695, %v691
        %v736 = vpack.c.b16 %v696, %v692
        %v737 = vpack.c.b16 %v697, %v693
        %v738 = vpack.c.b16 %v702, %v698
        %v739 = vpack.c.b16 %v703, %v699
        %v740 = vpack.c.b16 %v704, %v700
        %v741 = vpack.c.b16 %v705, %v701
        %v742 = vpack.c.b16 %v710, %v706
        %v743 = vpack.c.b16 %v711, %v707
        %v744 = vpack.c.b16 %v712, %v708
        %v745 = vpack.c.b16 %v713, %v709
        %778 = vmatpush.bf16.msra.mxu0 %v742
        %779 = vmatpush.bf16.msra.mxu0 %v738
        %780 = vmatpush.bf16.msra.mxu0 %v734
        %781 = vmatpush.bf16.msra.mxu0 %v730
        %782 = vmatpush.bf16.msra.mxu0 %v726
        %783 = vmatpush.bf16.msra.mxu0 %v722
        %784 = vmatpush.bf16.msra.mxu0 %v718
        %785 = vmatpush.bf16.msra.mxu0 %v714
        %786 = vmatmul.bf16.gmra.mxu0 %v585
        %v787 = vpop.f32.mrf.mxu0
        %v788 = vadd.f32 0.0, %v787
        %v789 = vpop.f32.mrf.mxu0
        %790 = vdwg.mxu0
        %791 = vmatpush.bf16.msra.mxu0 %v743
        %792 = vmatpush.bf16.msra.mxu0 %v739
        %793 = vmatpush.bf16.msra.mxu0 %v735
        %794 = vmatpush.bf16.msra.mxu0 %v731
        %795 = vmatpush.bf16.msra.mxu0 %v727
        %796 = vmatpush.bf16.msra.mxu0 %v723
        %797 = vmatpush.bf16.msra.mxu0 %v719
        %798 = vmatpush.bf16.msra.mxu0 %v715
        %799 = vmatmul.bf16.gmra.mxu0 %v585
        %v800 = vpop.f32.mrf.mxu0
        %v801 = vadd.f32 0.0, %v800
        %v802 = vpop.f32.mrf.mxu0
        %803 = vdwg.mxu0
        %804 = vmatpush.bf16.msra.mxu0 %v744
        %805 = vmatpush.bf16.msra.mxu0 %v740
        %806 = vmatpush.bf16.msra.mxu0 %v736
        %807 = vmatpush.bf16.msra.mxu0 %v732
        %808 = vmatpush.bf16.msra.mxu0 %v728
        %809 = vmatpush.bf16.msra.mxu0 %v724
        %810 = vmatpush.bf16.msra.mxu0 %v720
        %811 = vmatpush.bf16.msra.mxu0 %v716
        %812 = vmatmul.bf16.gmra.mxu0 %v585
        %v813 = vpop.f32.mrf.mxu0
        %v814 = vadd.f32 0.0, %v813
        %v815 = vpop.f32.mrf.mxu0
        %816 = vdwg.mxu0
        %817 = vmatpush.bf16.msra.mxu0 %v745
        %818 = vmatpush.bf16.msra.mxu0 %v741
        %819 = vmatpush.bf16.msra.mxu0 %v737
        %820 = vmatpush.bf16.msra.mxu0 %v733
        %821 = vmatpush.bf16.msra.mxu0 %v729
        %822 = vmatpush.bf16.msra.mxu0 %v725
        %823 = vmatpush.bf16.msra.mxu0 %v721
        %824 = vmatpush.bf16.msra.mxu0 %v717
        %825 = vmatmul.bf16.gmra.mxu0 %v585
        %v826 = vpop.f32.mrf.mxu0
        %v827 = vadd.f32 0.0, %v826
        %v828 = vpop.f32.mrf.mxu0
        %829 = vdwg.mxu0
        %v830 = vadd.f32 %v581, %v788
        %v831 = vadd.f32 %v582, %v801
        %v832 = vadd.f32 %v583, %v814
        %v833 = vadd.f32 %v584, %v827
        %v834 = vtanh.pop %v830
        %v835 = vtanh.pop %v831
        %v836 = vtanh.pop %v832
        %v837 = vtanh.pop %v833
        %v838 = vmul.f32 %v834, %v568
        %v839 = vmul.f32 %v835, %v569
        %v840 = vmul.f32 %v836, %v570
        %v841 = vmul.f32 %v837, %v571
        %v842 = vadd.f32 %v838, %v572
        %v843 = vadd.f32 %v839, %v573
        %v844 = vadd.f32 %v840, %v574
        %v845 = vadd.f32 %v841, %v575
        %v846 = vmul.f32 %v843, %v577
        %v847 = vmul.f32 %v842, %v844
        %v848 = vadd.f32 %v846, %v847
        %v849 = vtanh.pop %v848
        %v850 = vmul.f32 %v845, %v849
        %s851 = smul.u32 1, 4
        %s852 = smul.addr %s851, 8
        %s853 = scalar_lea.vmem [#allocation2], %s852
        %v854 = vld [vmem:[%s853] sm:$0xff]
        %v855 = vld [vmem:[%s853 + $0x8] sm:$0xff]
        %v856 = vld [vmem:[%s853 + $0x10] sm:$0xff]
        %v857 = vld [vmem:[%s853 + $0x18] sm:$0xff]
        %v858 = vpack.c.bf16 %v850, %v850
        %859 = vmatpush.bf16.msra.mxu0 %v742
        %860 = vmatpush.bf16.msra.mxu0 %v738
        %861 = vmatpush.bf16.msra.mxu0 %v734
        %862 = vmatpush.bf16.msra.mxu0 %v730
        %863 = vmatpush.bf16.msra.mxu0 %v726
        %864 = vmatpush.bf16.msra.mxu0 %v722
        %865 = vmatpush.bf16.msra.mxu0 %v718
        %866 = vmatpush.bf16.msra.mxu0 %v714
        %867 = vmatmul.bf16.gmra.mxu0 %v858
        %v868 = vpop.f32.mrf.mxu0
        %v869 = vadd.f32 0.0, %v868
        %v870 = vpop.f32.mrf.mxu0
        %871 = vdwg.mxu0
        %872 = vmatpush.bf16.msra.mxu0 %v743
        %873 = vmatpush.bf16.msra.mxu0 %v739
        %874 = vmatpush.bf16.msra.mxu0 %v735
        %875 = vmatpush.bf16.msra.mxu0 %v731
        %876 = vmatpush.bf16.msra.mxu0 %v727
        %877 = vmatpush.bf16.msra.mxu0 %v723
        %878 = vmatpush.bf16.msra.mxu0 %v719
        %879 = vmatpush.bf16.msra.mxu0 %v715
        %880 = vmatmul.bf16.gmra.mxu0 %v858
        %v881 = vpop.f32.mrf.mxu0
        %v882 = vadd.f32 0.0, %v881
        %v883 = vpop.f32.mrf.mxu0
        %884 = vdwg.mxu0
        %885 = vmatpush.bf16.msra.mxu0 %v744
        %886 = vmatpush.bf16.msra.mxu0 %v740
        %887 = vmatpush.bf16.msra.mxu0 %v736
        %888 = vmatpush.bf16.msra.mxu0 %v732
        %889 = vmatpush.bf16.msra.mxu0 %v728
        %890 = vmatpush.bf16.msra.mxu0 %v724
        %891 = vmatpush.bf16.msra.mxu0 %v720
        %892 = vmatpush.bf16.msra.mxu0 %v716
        %893 = vmatmul.bf16.gmra.mxu0 %v858
        %v894 = vpop.f32.mrf.mxu0
        %v895 = vadd.f32 0.0, %v894
        %v896 = vpop.f32.mrf.mxu0
        %897 = vdwg.mxu0
        %898 = vmatpush.bf16.msra.mxu0 %v745
        %899 = vmatpush.bf16.msra.mxu0 %v741
        %900 = vmatpush.bf16.msra.mxu0 %v737
        %901 = vmatpush.bf16.msra.mxu0 %v733
        %902 = vmatpush.bf16.msra.mxu0 %v729
        %903 = vmatpush.bf16.msra.mxu0 %v725
        %904 = vmatpush.bf16.msra.mxu0 %v721
        %905 = vmatpush.bf16.msra.mxu0 %v717
        %906 = vmatmul.bf16.gmra.mxu0 %v858
        %v907 = vpop.f32.mrf.mxu0
        %v908 = vadd.f32 0.0, %v907
        %v909 = vpop.f32.mrf.mxu0
        %910 = vdwg.mxu0
        %v911 = vadd.f32 %v854, %v869
        %v912 = vadd.f32 %v855, %v882
        %v913 = vadd.f32 %v856, %v895
        %v914 = vadd.f32 %v857, %v908
        %v915 = vtanh.pop %v911
        %v916 = vtanh.pop %v912
        %v917 = vtanh.pop %v913
        %v918 = vtanh.pop %v914
        %v919 = vmul.f32 %v915, %v568
        %v920 = vmul.f32 %v916, %v569
        %v921 = vmul.f32 %v917, %v570
        %v922 = vmul.f32 %v918, %v571
        %v923 = vadd.f32 %v919, %v572
        %v924 = vadd.f32 %v920, %v573
        %v925 = vadd.f32 %v921, %v574
        %v926 = vadd.f32 %v922, %v575
        %v927 = vmul.f32 %v924, %v848
        %v928 = vmul.f32 %v923, %v925
        %v929 = vadd.f32 %v927, %v928
        %v930 = vtanh.pop %v929
        %v931 = vmul.f32 %v926, %v930
        %s932 = smul.u32 2, 4
        %s933 = smul.addr %s932, 8
        %s934 = scalar_lea.vmem [#allocation2], %s933
        %v935 = vld [vmem:[%s934] sm:$0xff]
        %v936 = vld [vmem:[%s934 + $0x8] sm:$0xff]
        %v937 = vld [vmem:[%s934 + $0x10] sm:$0xff]
        %v938 = vld [vmem:[%s934 + $0x18] sm:$0xff]
        %v939 = vpack.c.bf16 %v931, %v931
        %940 = vmatpush.bf16.msra.mxu0 %v742
        %941 = vmatpush.bf16.msra.mxu0 %v738
        %942 = vmatpush.bf16.msra.mxu0 %v734
        %943 = vmatpush.bf16.msra.mxu0 %v730
        %944 = vmatpush.bf16.msra.mxu0 %v726
        %945 = vmatpush.bf16.msra.mxu0 %v722
        %946 = vmatpush.bf16.msra.mxu0 %v718
        %947 = vmatpush.bf16.msra.mxu0 %v714
        %948 = vmatmul.bf16.gmra.mxu0 %v939
        %v949 = vpop.f32.mrf.mxu0
        %v950 = vadd.f32 0.0, %v949
        %v951 = vpop.f32.mrf.mxu0
        %952 = vdwg.mxu0
        %953 = vmatpush.bf16.msra.mxu0 %v743
        %954 = vmatpush.bf16.msra.mxu0 %v739
        %955 = vmatpush.bf16.msra.mxu0 %v735
        %956 = vmatpush.bf16.msra.mxu0 %v731
        %957 = vmatpush.bf16.msra.mxu0 %v727
        %958 = vmatpush.bf16.msra.mxu0 %v723
        %959 = vmatpush.bf16.msra.mxu0 %v719
        %960 = vmatpush.bf16.msra.mxu0 %v715
        %961 = vmatmul.bf16.gmra.mxu0 %v939
        %v962 = vpop.f32.mrf.mxu0
        %v963 = vadd.f32 0.0, %v962
        %v964 = vpop.f32.mrf.mxu0
        %965 = vdwg.mxu0
        %966 = vmatpush.bf16.msra.mxu0 %v744
        %967 = vmatpush.bf16.msra.mxu0 %v740
        %968 = vmatpush.bf16.msra.mxu0 %v736
        %969 = vmatpush.bf16.msra.mxu0 %v732
        %970 = vmatpush.bf16.msra.mxu0 %v728
        %971 = vmatpush.bf16.msra.mxu0 %v724
        %972 = vmatpush.bf16.msra.mxu0 %v720
        %973 = vmatpush.bf16.msra.mxu0 %v716
        %974 = vmatmul.bf16.gmra.mxu0 %v939
        %v975 = vpop.f32.mrf.mxu0
        %v976 = vadd.f32 0.0, %v975
        %v977 = vpop.f32.mrf.mxu0
        %978 = vdwg.mxu0
        %979 = vmatpush.bf16.msra.mxu0 %v745
        %980 = vmatpush.bf16.msra.mxu0 %v741
        %981 = vmatpush.bf16.msra.mxu0 %v737
        %982 = vmatpush.bf16.msra.mxu0 %v733
        %983 = vmatpush.bf16.msra.mxu0 %v729
        %984 = vmatpush.bf16.msra.mxu0 %v725
        %985 = vmatpush.bf16.msra.mxu0 %v721
        %986 = vmatpush.bf16.msra.mxu0 %v717
        %987 = vmatmul.bf16.gmra.mxu0 %v939
        %v988 = vpop.f32.mrf.mxu0
        %v989 = vadd.f32 0.0, %v988
        %v990 = vpop.f32.mrf.mxu0
        %991 = vdwg.mxu0
        %v992 = vadd.f32 %v935, %v950
        %v993 = vadd.f32 %v936, %v963
        %v994 = vadd.f32 %v937, %v976
        %v995 = vadd.f32 %v938, %v989
        %v996 = vtanh.pop %v992
        %v997 = vtanh.pop %v993
        %v998 = vtanh.pop %v994
        %v999 = vtanh.pop %v995
        %v1000 = vmul.f32 %v996, %v568
        %v1001 = vmul.f32 %v997, %v569
        %v1002 = vmul.f32 %v998, %v570
        %v1003 = vmul.f32 %v999, %v571
        %v1004 = vadd.f32 %v1000, %v572
        %v1005 = vadd.f32 %v1001, %v573
        %v1006 = vadd.f32 %v1002, %v574
        %v1007 = vadd.f32 %v1003, %v575
        %v1008 = vmul.f32 %v1005, %v929
        %v1009 = vmul.f32 %v1004, %v1006
        %v1010 = vadd.f32 %v1008, %v1009
        %v1011 = vtanh.pop %v1010
        %v1012 = vmul.f32 %v1007, %v1011
        %s1013 = smul.u32 3, 4
        %s1014 = smul.addr %s1013, 8
        %s1015 = scalar_lea.vmem [#allocation2], %s1014
        %v1016 = vld [vmem:[%s1015] sm:$0xff]
        %v1017 = vld [vmem:[%s1015 + $0x8] sm:$0xff]
        %v1018 = vld [vmem:[%s1015 + $0x10] sm:$0xff]
        %v1019 = vld [vmem:[%s1015 + $0x18] sm:$0xff]
        %v1020 = vpack.c.bf16 %v1012, %v1012
        %1021 = vmatpush.bf16.msra.mxu0 %v742
        %1022 = vmatpush.bf16.msra.mxu0 %v738
        %1023 = vmatpush.bf16.msra.mxu0 %v734
        %1024 = vmatpush.bf16.msra.mxu0 %v730
        %1025 = vmatpush.bf16.msra.mxu0 %v726
        %1026 = vmatpush.bf16.msra.mxu0 %v722
        %1027 = vmatpush.bf16.msra.mxu0 %v718
        %1028 = vmatpush.bf16.msra.mxu0 %v714
        %1029 = vmatmul.bf16.gmra.mxu0 %v1020
        %v1030 = vpop.f32.mrf.mxu0
        %v1031 = vadd.f32 0.0, %v1030
        %v1032 = vpop.f32.mrf.mxu0
        %1033 = vdwg.mxu0
        %1034 = vmatpush.bf16.msra.mxu0 %v743
        %1035 = vmatpush.bf16.msra.mxu0 %v739
        %1036 = vmatpush.bf16.msra.mxu0 %v735
        %1037 = vmatpush.bf16.msra.mxu0 %v731
        %1038 = vmatpush.bf16.msra.mxu0 %v727
        %1039 = vmatpush.bf16.msra.mxu0 %v723
        %1040 = vmatpush.bf16.msra.mxu0 %v719
        %1041 = vmatpush.bf16.msra.mxu0 %v715
        %1042 = vmatmul.bf16.gmra.mxu0 %v1020
        %v1043 = vpop.f32.mrf.mxu0
        %v1044 = vadd.f32 0.0, %v1043
        %v1045 = vpop.f32.mrf.mxu0
        %1046 = vdwg.mxu0
        %1047 = vmatpush.bf16.msra.mxu0 %v744
        %1048 = vmatpush.bf16.msra.mxu0 %v740
        %1049 = vmatpush.bf16.msra.mxu0 %v736
        %1050 = vmatpush.bf16.msra.mxu0 %v732
        %1051 = vmatpush.bf16.msra.mxu0 %v728
        %1052 = vmatpush.bf16.msra.mxu0 %v724
        %1053 = vmatpush.bf16.msra.mxu0 %v720
        %1054 = vmatpush.bf16.msra.mxu0 %v716
        %1055 = vmatmul.bf16.gmra.mxu0 %v1020
        %v1056 = vpop.f32.mrf.mxu0
        %v1057 = vadd.f32 0.0, %v1056
        %v1058 = vpop.f32.mrf.mxu0
        %1059 = vdwg.mxu0
        %1060 = vmatpush.bf16.msra.mxu0 %v745
        %1061 = vmatpush.bf16.msra.mxu0 %v741
        %1062 = vmatpush.bf16.msra.mxu0 %v737
        %1063 = vmatpush.bf16.msra.mxu0 %v733
        %1064 = vmatpush.bf16.msra.mxu0 %v729
        %1065 = vmatpush.bf16.msra.mxu0 %v725
        %1066 = vmatpush.bf16.msra.mxu0 %v721
        %1067 = vmatpush.bf16.msra.mxu0 %v717
        %1068 = vmatmul.bf16.gmra.mxu0 %v1020
        %v1069 = vpop.f32.mrf.mxu0
        %v1070 = vadd.f32 0.0, %v1069
        %v1071 = vpop.f32.mrf.mxu0
        %1072 = vdwg.mxu0
        %v1073 = vadd.f32 %v1016, %v1031
        %v1074 = vadd.f32 %v1017, %v1044
        %v1075 = vadd.f32 %v1018, %v1057
        %v1076 = vadd.f32 %v1019, %v1070
        %v1077 = vtanh.pop %v1073
        %v1078 = vtanh.pop %v1074
        %v1079 = vtanh.pop %v1075
        %v1080 = vtanh.pop %v1076
        %v1081 = vmul.f32 %v1077, %v568
        %v1082 = vmul.f32 %v1078, %v569
        %v1083 = vmul.f32 %v1079, %v570
        %v1084 = vmul.f32 %v1080, %v571
        %v1085 = vadd.f32 %v1081, %v572
        %v1086 = vadd.f32 %v1082, %v573
        %v1087 = vadd.f32 %v1083, %v574
        %v1088 = vadd.f32 %v1084, %v575
        %v1089 = vmul.f32 %v1086, %v1010
        %v1090 = vmul.f32 %v1085, %v1087
        %v1091 = vadd.f32 %v1089, %v1090
        %v1092 = vtanh.pop %v1091
        %v1093 = vmul.f32 %v1088, %v1092
        %1094 = vst [vmem:[#allocation3] sm:$0xff] %v1093
        %1095 = vst [vmem:[#allocation4] sm:$0xff] %v1091
        %v1096 = vpack.c.bf16 %v1093, %v1093
        %v1097 = vld [vmem:[#allocation13] sm:$0xf]
        %v1098 = vld [vmem:[#allocation13 + $0x4] sm:$0xf]
        %v1099 = vld [vmem:[#allocation13 + $0x8] sm:$0xf]
        %v1100 = vld [vmem:[#allocation13 + $0xc] sm:$0xf]
        %v1101 = vld [vmem:[#allocation13 + $0x10] sm:$0xf]
        %v1102 = vld [vmem:[#allocation13 + $0x14] sm:$0xf]
        %v1103 = vld [vmem:[#allocation13 + $0x18] sm:$0xf]
        %v1104 = vld [vmem:[#allocation13 + $0x1c] sm:$0xf]
        %v1105 = vld [vmem:[#allocation13 + $0x20] sm:$0xf]
        %v1106 = vld [vmem:[#allocation13 + $0x24] sm:$0xf]
        %v1107 = vld [vmem:[#allocation13 + $0x28] sm:$0xf]
        %v1108 = vld [vmem:[#allocation13 + $0x2c] sm:$0xf]
        %v1109 = vld [vmem:[#allocation13 + $0x30] sm:$0xf]
        %v1110 = vld [vmem:[#allocation13 + $0x34] sm:$0xf]
        %v1111 = vld [vmem:[#allocation13 + $0x38] sm:$0xf]
        %v1112 = vld [vmem:[#allocation13 + $0x3c] sm:$0xf]
        %v1113 = vld [vmem:[%s5] sm:$0x1]
        %v1115 = vperm.slane %v1113, 0
        %v1133 = vunpack.c.l.b16 %v1097
        %v1134 = vunpack.c.l.b16 %v1098
        %v1135 = vunpack.c.l.b16 %v1099
        %v1136 = vunpack.c.l.b16 %v1100
        %v1137 = vunpack.c.l.b16 %v1101
        %v1138 = vunpack.c.l.b16 %v1102
        %v1139 = vunpack.c.l.b16 %v1103
        %v1140 = vunpack.c.l.b16 %v1104
        %v1141 = vunpack.c.l.b16 %v1105
        %v1142 = vunpack.c.l.b16 %v1106
        %v1143 = vunpack.c.l.b16 %v1107
        %v1144 = vunpack.c.l.b16 %v1108
        %v1145 = vunpack.c.l.b16 %v1109
        %v1146 = vunpack.c.l.b16 %v1110
        %v1147 = vunpack.c.l.b16 %v1111
        %v1148 = vunpack.c.l.b16 %v1112
        %v1149 = vpack.c.b16 %v1134, %v1133
        %v1150 = vpack.c.b16 %v1136, %v1135
        %v1151 = vpack.c.b16 %v1138, %v1137
        %v1152 = vpack.c.b16 %v1140, %v1139
        %v1153 = vpack.c.b16 %v1142, %v1141
        %v1154 = vpack.c.b16 %v1144, %v1143
        %v1155 = vpack.c.b16 %v1146, %v1145
        %v1156 = vpack.c.b16 %v1148, %v1147
        %1165 = vmatpush.bf16.msra.mxu0 %v1156
        %1166 = vmatpush.bf16.msra.mxu0 %v1155
        %1167 = vmatpush.bf16.msra.mxu0 %v1154
        %1168 = vmatpush.bf16.msra.mxu0 %v1153
        %1169 = vmatpush.bf16.msra.mxu0 %v1152
        %1170 = vmatpush.bf16.msra.mxu0 %v1151
        %1171 = vmatpush.bf16.msra.mxu0 %v1150
        %1172 = vmatpush.bf16.msra.mxu0 %v1149
        %1173 = vmatmul.bf16.gmra.mxu0 %v1096
        %v1174 = vpop.f32.mrf.mxu0
        %v1175 = vadd.f32 %v1115, %v1174
        %v1176 = vpop.f32.mrf.mxu0
        %1177 = vdwg.mxu0
        %1178 = vst [vmem:[#allocation14] sm:$0xff] %v1175
        // Predicated region
        $region69: #{tpu_custom_call.1} parent=43 // pred_check
          %p1179 = pneg %p167
        $region70: #{tpu_custom_call.1} parent=43 // pred_check_branch
          %1181 = sbr.rel (%p1179) target = $region72
        $region71: #{tpu_custom_call.1} parent=43 // pred_region
          %1183 = vsyncadd [#allocation7], 0
          %s1185 = sshll.u32 [#allocation14], 4
          %s1186 = int_to_ptr.vmem [resolvable:$true] %s1185
          %s1187 = sshll.u32 %s6, 4
          %s1188 = int_to_ptr.hbm [resolvable:$true] %s1187
          %1190 = dma.vmem_to_hbm [thread:$0]  %s1186, 128, %s1188, [#allocation7]
        $region72: #{tpu_custom_call.1} parent=43 // pred_fallthru
          _
        // Predicated region
        $region73: #{tpu_custom_call.1} parent=43 // pred_check
          %p1191 = pneg %p167
        $region74: #{tpu_custom_call.1} parent=43 // pred_check_branch
          %1193 = sbr.rel (%p1191) target = $region76
        $region75: #{tpu_custom_call.1} parent=43 // pred_region
          %1195 = dma.done [#allocation7], 128
        $region76: #{tpu_custom_call.1} parent=43 // pred_fallthru
          _
      $region44: #{tpu_custom_call.1} parent=5 // pred_fallthru
        _
      %p1196 = scmp.le.s32.totalorder 2, %s18
      // Predicated region
      $region77: #{tpu_custom_call.1} parent=5 // pred_check
        %p1197 = pneg %p1196
      $region78: #{tpu_custom_call.1} parent=5 // pred_check_branch
        %1199 = sbr.rel (%p1197) target = $region80
      $region79: #{tpu_custom_call.1} parent=5 // pred_region
        %s1200 = ssub.s32 %s18, 2
      $region80: #{tpu_custom_call.1} parent=5 // pred_fallthru
        _
    $region6: #{tpu_custom_call.1} parent=1 // loop_footer
      %s22 = sadd.s32 1, %s18
    $region7: #{tpu_custom_call.1} parent=1 // loop_footer_branch
      %17 = sbr.rel target = $region3
    $region8: #{tpu_custom_call.1} parent=1 // loop_exit
      _
    %1201 = vsyncpa [#allocation6], 1
    %s1202 = scalar_lea.sflag [#allocation6], 1
    %1203 = vsyncpa %s1202, 1
    %1204 = vsyncpa [#allocation9], 1
    %1205 = vsyncpa [#allocation12], 1
    %1206 = vsyncpa [#allocation7], 1
    %s1207 = scalar_lea.sflag [#allocation7], 1
    %1208 = vsyncpa %s1207, 1

</llo_original>
